<compile_context>
chip_gen: v5e
topology: v5e:2x2
jax: 0.10.0
libtpu: 0.0.40
codegen_flags: <defaults>
</compile_context>

<pallas_src>
import math

import numpy as np
import jax
import jax.numpy as jnp
from jax.experimental import pallas as pl
from jax.experimental.pallas import tpu as pltpu

EMBED_DIM = 128
N_HEAD = 8
HEAD_DIM = EMBED_DIM // N_HEAD          # key/value dim per head = 16
FF_DIM = 512
LN_EPS = 1e-5


def _layernorm(x, gamma, beta):
    # x: (N, D); gamma/beta: (1, D).  Matches nn.LayerNorm (biased variance).
    mu = jnp.mean(x, axis=-1, keepdims=True)
    var = jnp.mean((x - mu) * (x - mu), axis=-1, keepdims=True)
    return (x - mu) * jax.lax.rsqrt(var + LN_EPS) * gamma + beta


def decoder_layer_kernel(
    tgt_ref, mem_ref, mask_ref,
    ln1_g_ref, ln1_b_ref,
    wq_ref, wkv_ref, wo_ref,
    ln2_g_ref, ln2_b_ref,
    w1_ref, b1_ref, w2_ref, b2_ref,
    out_ref,
):
    Bb, Nq, D = tgt_ref.shape
    Nm = mem_ref.shape[1]
    HNm, D2 = mask_ref.shape                  # (H*Nm, 2D)
    H = HNm // Nm
    bf16 = jnp.bfloat16

    # NOTE: all (Bb, n, D) -> (Bb*n, D) reshapes below are free only because
    # Nq (8) and Nm (16) are multiples of the 8-row sublane tile.
    tgt = tgt_ref[...].reshape(Bb * Nq, D)    # residual stream (pre-norm)
    mem = mem_ref[...].reshape(Bb * Nm, D)

    # ---- LayerNorm 1: one fused pass over stacked tgt + memory rows ----
    x = jnp.concatenate([tgt, mem], axis=0)               # (Bb*(Nq+Nm), D)
    xn = _layernorm(x, ln1_g_ref[...], ln1_b_ref[...])
    tgt_n = xn[:Bb * Nq, :]
    mem_n = xn[Bb * Nq:, :]

    # ---- fused lane-dense projections (1/sqrt(kd) folded into Wq host-side) ----
    q = jnp.dot(tgt_n.astype(bf16), wq_ref[...],
                preferred_element_type=jnp.float32).reshape(Bb, Nq, D)
    kv = jnp.dot(mem_n.astype(bf16), wkv_ref[...],
                 preferred_element_type=jnp.float32).reshape(Bb, Nm, D2)

    # ---- block-diagonal head slab: tile + mask K and V in a single pass ----
    mask2 = mask_ref[...]                                   # (H*Nm, 2D) f32
    kv_rep = jnp.broadcast_to(kv[:, None, :, :],
                              (Bb, H, Nm, D2)).reshape(Bb, HNm, D2)
    kv_blk = (kv_rep * mask2[None, :, :]).astype(bf16)      # (Bb, H*Nm, 2D)
    k_blk = kv_blk[:, :, :D]
    v_blk = kv_blk[:, :, D:]

    # All heads' scores packed on the lane axis; contract last dims so no
    # explicit K transpose is materialized.
    scores = jnp.einsum('bqd,bkd->bqk', q.astype(bf16), k_blk,
                        preferred_element_type=jnp.float32)  # (Bb, Nq, H*Nm)

    # Global per-row max is constant within every head group -> per-head
    # softmax is unchanged while exp/max stay lane-dense.
    m = jnp.max(scores, axis=-1, keepdims=True)
    e = jnp.exp(scores - m)
    e_bf = e.astype(bf16)

    # Numerator: batched matmul, heads packed on lanes.
    num = jnp.einsum('bqk,bkd->bqd', e_bf, v_blk,
                     preferred_element_type=jnp.float32).reshape(Bb * Nq, D)
    # Per-head denominators: ONE dense matmul against the selector mask.
    den = jnp.dot(e_bf.reshape(Bb * Nq, HNm), mask2[:, :D].astype(bf16),
                  preferred_element_type=jnp.float32)        # (Bb*Nq, D)
    den = jnp.maximum(den, 1e-30)            # guard a fully-underflowed head
    heads = num * pl.reciprocal(den, approx=True)            # (Bb*Nq, D)

    # Output projection (heads already head-major on the lane axis).
    attn = jnp.dot(heads.astype(bf16), wo_ref[...],
                   preferred_element_type=jnp.float32)       # (Bb*Nq, D)

    h = attn + tgt                             # residual 1
    hn = _layernorm(h, ln2_g_ref[...], ln2_b_ref[...])

    ff = jnp.dot(hn.astype(bf16), w1_ref[...],
                 preferred_element_type=jnp.float32) + b1_ref[...]
    ff = jnp.maximum(ff, 0.0)
    ff = jnp.dot(ff.astype(bf16), w2_ref[...],
                 preferred_element_type=jnp.float32) + b2_ref[...]

    out_ref[...] = (ff + h).reshape(Bb, Nq, D).astype(out_ref.dtype)


def init_decoder_params(key, embedding_dim=EMBED_DIM, n_head=N_HEAD):
    """Deterministic synthetic parameters matching the PyTorch module's shapes."""
    kd = embedding_dim // n_head
    ks = jax.random.split(key, 8)

    def uni(k, shape, fan):
        stdv = 1.0 / math.sqrt(fan)
        return jax.random.uniform(k, shape, jnp.float32, -stdv, stdv)

    return dict(
        ln1_g=jnp.ones((1, embedding_dim), jnp.float32),
        ln1_b=jnp.zeros((1, embedding_dim), jnp.float32),
        ln2_g=jnp.ones((1, embedding_dim), jnp.float32),
        ln2_b=jnp.zeros((1, embedding_dim), jnp.float32),
        wq=uni(ks[0], (n_head, embedding_dim, kd), kd),
        wk=uni(ks[1], (n_head, embedding_dim, kd), kd),
        wv=uni(ks[2], (n_head, embedding_dim, kd), kd),
        wo=uni(ks[3], (n_head, kd, embedding_dim), embedding_dim),
        w1=uni(ks[4], (embedding_dim, FF_DIM), embedding_dim),
        b1=uni(ks[5], (1, FF_DIM), embedding_dim),
        w2=uni(ks[6], (FF_DIM, embedding_dim), FF_DIM),
        b2=uni(ks[7], (1, embedding_dim), FF_DIM),
    )


def _head_selector_mask_kv(n_head, n_mem, head_dim):
    """(H*Nm, 2*H*kd) 0/1 block-diag selector, replicated for the K and V halves."""
    r = np.arange(n_head * n_mem)[:, None] // n_mem
    c = np.arange(n_head * head_dim)[None, :] // head_dim
    m = (r == c).astype(np.float32)                          # (H*Nm, D)
    return jnp.asarray(np.concatenate([m, m], axis=1))       # (H*Nm, 2D)


def prepare_decoder_params(params, n_mem):
    """Precompute (once, outside the jitted forward) fused bf16 weights + mask."""
    wq = params["wq"]
    H, D, kd = wq.shape
    scale = 1.0 / math.sqrt(kd)
    to_fused = lambda w: jnp.transpose(w, (1, 0, 2)).reshape(D, H * kd)
    wq_f = (to_fused(wq) * scale).astype(jnp.bfloat16)                     # (D, D)
    wkv_f = jnp.concatenate(
        [to_fused(params["wk"]), to_fused(params["wv"])], axis=1
    ).astype(jnp.bfloat16)                                                 # (D, 2D)
    wo_f = params["wo"].reshape(H * kd, D).astype(jnp.bfloat16)            # (D, D)
    return dict(
        mask_kv=_head_selector_mask_kv(H, n_mem, kd),
        ln1_g=params["ln1_g"], ln1_b=params["ln1_b"],
        ln2_g=params["ln2_g"], ln2_b=params["ln2_b"],
        wq=wq_f, wkv=wkv_f, wo=wo_f,
        w1=params["w1"].astype(jnp.bfloat16), b1=params["b1"],
        w2=params["w2"].astype(jnp.bfloat16), b2=params["b2"],
    )


@jax.jit
def decoder_forward(tgt, memory, fp):
    B, Nq, D = tgt.shape
    Nm = memory.shape[1]
    assert D == EMBED_DIM

    # ---- batch-block sizing: aim for >=256 rows/step, >=2 grid steps, VMEM cap ----
    max_bb = max(1, 256 // Nq)
    bb = min(max_bb, (B + 1) // 2) if B >= 2 else 1
    slab_bytes = N_HEAD * Nm * 2 * D * 6       # f32 + bf16 block-diag slab per batch el.
    bb = max(1, min(bb, (24 << 20) // slab_bytes))
    B_pad = ((B + bb - 1) // bb) * bb
    if B_pad != B:
        pad = ((0, B_pad - B), (0, 0), (0, 0))
        tgt_p = jnp.pad(tgt, pad)
        mem_p = jnp.pad(memory, pad)
    else:
        tgt_p, mem_p = tgt, memory

    grid = (B_pad // bb,)
    full = lambda shape: pl.BlockSpec(shape, lambda b: (0,) * len(shape))

    grid_spec = pltpu.PrefetchScalarGridSpec(
        num_scalar_prefetch=0,
        grid=grid,
        in_specs=[
            pl.BlockSpec((bb, Nq, D), lambda b: (b, 0, 0)),       # tgt
            pl.BlockSpec((bb, Nm, D), lambda b: (b, 0, 0)),       # memory
            full((N_HEAD * Nm, 2 * D)),                           # head selector mask (K|V)
            full((1, D)), full((1, D)),                           # ln1 gamma/beta
            full((D, D)),                                         # Wq fused (pre-scaled)
            full((D, 2 * D)),                                     # Wk|Wv fused
            full((D, D)),                                         # Wo fused
            full((1, D)), full((1, D)),                           # ln2 gamma/beta
            full((D, FF_DIM)), full((1, FF_DIM)),                 # ff linear 1
            full((FF_DIM, D)), full((1, D)),                      # ff linear 2
        ],
        out_specs=pl.BlockSpec((bb, Nq, D), lambda b: (b, 0, 0)),
    )

    out = pl.pallas_call(
        decoder_layer_kernel,
        out_shape=jax.ShapeDtypeStruct((B_pad, Nq, D), tgt.dtype),
        grid_spec=grid_spec,
        compiler_params=pltpu.CompilerParams(
            dimension_semantics=("parallel",),
            vmem_limit_bytes=48 * 1024 * 1024,
        ),
    )(
        tgt_p, mem_p, fp["mask_kv"],
        fp["ln1_g"], fp["ln1_b"],
        fp["wq"], fp["wkv"], fp["wo"],
        fp["ln2_g"], fp["ln2_b"],
        fp["w1"], fp["b1"], fp["w2"], fp["b2"],
    )
    return out[:B] if B_pad != B else out


# ---------------- pure-JAX reference (mirrors the PyTorch forward) -----------
def decoder_reference(tgt, memory, p):
    def ln(x, g, b):
        mu = jnp.mean(x, axis=-1, keepdims=True)
        var = jnp.mean((x - mu) ** 2, axis=-1, keepdims=True)
        return (x - mu) / jnp.sqrt(var + LN_EPS) * g + b

    h0 = tgt
    tgt_n = ln(tgt, p["ln1_g"], p["ln1_b"])
    mem_n = ln(memory, p["ln1_g"], p["ln1_b"])

    Q = jnp.einsum("bnd,hdk->hbnk", tgt_n, p["wq"])
    K = jnp.einsum("bmd,hdk->hbmk", mem_n, p["wk"])
    V = jnp.einsum("bmd,hdk->hbmk", mem_n, p["wv"])
    U = (1.0 / math.sqrt(HEAD_DIM)) * jnp.einsum("hbnk,hbmk->hbnm", Q, K)
    A = jax.nn.softmax(U, axis=-1)
    heads = jnp.einsum("hbnm,hbmk->hbnk", A, V)
    out = jnp.einsum("hbnk,hkd->bnd", heads, p["wo"])

    h = out + h0
    h1 = h
    hn = ln(h, p["ln2_g"], p["ln2_b"])
    ff = jnp.maximum(hn @ p["w1"] + p["b1"], 0.0) @ p["w2"] + p["b2"]
    return ff + h1


if __name__ == "__main__":
    key = jax.random.PRNGKey(0)
    k_p, k_t, k_m = jax.random.split(key, 3)

    B, Nq, Nm = 2, 8, 16
    params = init_decoder_params(k_p)
    fused = prepare_decoder_params(params, Nm)          # host-side, once
    tgt = jax.random.normal(k_t, (B, Nq, EMBED_DIM), jnp.float32)
    memory = jax.random.normal(k_m, (B, Nm, EMBED_DIM), jnp.float32)

    out = jax.block_until_ready(decoder_forward(tgt, memory, fused))
    ref = decoder_reference(tgt, memory, params)

    assert out.shape == (B, Nq, EMBED_DIM)
    err = float(jnp.max(jnp.abs(out - ref)))
    scale = float(jnp.maximum(1.0, jnp.max(jnp.abs(ref))))
    # bf16 matmul operands (f32 accumulation): tolerate ~1-3% of output scale.
    assert err <= 3e-2 * scale, (err, scale)

    print("KERNEL_OK")
</pallas_src>

<mosaic_0001>
module attributes {stable_mosaic.version = 11 : i64} {
  func.func @decoder_layer_kernel(%arg0: i32, %arg1: memref<1x8x128xf32, #tpu.memory_space<vmem>>, %arg2: memref<1x16x128xf32, #tpu.memory_space<vmem>>, %arg3: memref<128x256xf32, #tpu.memory_space<vmem>>, %arg4: memref<1x128xf32, #tpu.memory_space<vmem>>, %arg5: memref<1x128xf32, #tpu.memory_space<vmem>>, %arg6: memref<128x128xbf16, #tpu.memory_space<vmem>>, %arg7: memref<128x256xbf16, #tpu.memory_space<vmem>>, %arg8: memref<128x128xbf16, #tpu.memory_space<vmem>>, %arg9: memref<1x128xf32, #tpu.memory_space<vmem>>, %arg10: memref<1x128xf32, #tpu.memory_space<vmem>>, %arg11: memref<128x512xbf16, #tpu.memory_space<vmem>>, %arg12: memref<1x512xf32, #tpu.memory_space<vmem>>, %arg13: memref<512x128xbf16, #tpu.memory_space<vmem>>, %arg14: memref<1x128xf32, #tpu.memory_space<vmem>>, %arg15: memref<1x8x128xf32, #tpu.memory_space<vmem>>) attributes {dimension_semantics = [#tpu.dimension_semantics<parallel>], iteration_bounds = array<i64: 2>, scalar_prefetch = 0 : i64, scratch_operands = 0 : i64, tpu.core_type = #tpu.core_type<tc>, window_params = [{transform_indices = @transform_0, window_bounds = array<i64: 1, 8, 128>}, {transform_indices = @transform_1, window_bounds = array<i64: 1, 16, 128>}, {pipeline_mode = #tpu.pipeline_mode<synchronous>, transform_indices = @transform_2, window_bounds = array<i64: 128, 256>}, {pipeline_mode = #tpu.pipeline_mode<synchronous>, transform_indices = @transform_3, window_bounds = array<i64: 1, 128>}, {pipeline_mode = #tpu.pipeline_mode<synchronous>, transform_indices = @transform_4, window_bounds = array<i64: 1, 128>}, {pipeline_mode = #tpu.pipeline_mode<synchronous>, transform_indices = @transform_5, window_bounds = array<i64: 128, 128>}, {pipeline_mode = #tpu.pipeline_mode<synchronous>, transform_indices = @transform_6, window_bounds = array<i64: 128, 256>}, {pipeline_mode = #tpu.pipeline_mode<synchronous>, transform_indices = @transform_7, window_bounds = array<i64: 128, 128>}, {pipeline_mode = #tpu.pipeline_mode<synchronous>, transform_indices = @transform_8, window_bounds = array<i64: 1, 128>}, {pipeline_mode = #tpu.pipeline_mode<synchronous>, transform_indices = @transform_9, window_bounds = array<i64: 1, 128>}, {pipeline_mode = #tpu.pipeline_mode<synchronous>, transform_indices = @transform_10, window_bounds = array<i64: 128, 512>}, {pipeline_mode = #tpu.pipeline_mode<synchronous>, transform_indices = @transform_11, window_bounds = array<i64: 1, 512>}, {pipeline_mode = #tpu.pipeline_mode<synchronous>, transform_indices = @transform_12, window_bounds = array<i64: 512, 128>}, {pipeline_mode = #tpu.pipeline_mode<synchronous>, transform_indices = @transform_13, window_bounds = array<i64: 1, 128>}, {transform_indices = @transform_14, window_bounds = array<i64: 1, 8, 128>}]} {
    %c0 = arith.constant 0 : index
    %c0_0 = arith.constant 0 : index
    %c0_1 = arith.constant 0 : index
    %0 = vector.load %arg1[%c0, %c0_0, %c0_1] : memref<1x8x128xf32, #tpu.memory_space<vmem>>, vector<1x8x128xf32>
    %1 = vector.shape_cast %0 : vector<1x8x128xf32> to vector<8x128xf32>
    %c0_2 = arith.constant 0 : index
    %c0_3 = arith.constant 0 : index
    %c0_4 = arith.constant 0 : index
    %2 = vector.load %arg2[%c0_2, %c0_3, %c0_4] : memref<1x16x128xf32, #tpu.memory_space<vmem>>, vector<1x16x128xf32>
    %3 = vector.shape_cast %2 : vector<1x16x128xf32> to vector<16x128xf32>
    %4 = tpu.concatenate %1, %3 in 0 : vector<8x128xf32>, vector<16x128xf32> -> vector<24x128xf32>
    %c0_5 = arith.constant 0 : index
    %c0_6 = arith.constant 0 : index
    %5 = vector.load %arg4[%c0_5, %c0_6] : memref<1x128xf32, #tpu.memory_space<vmem>>, vector<1x128xf32>
    %c0_7 = arith.constant 0 : index
    %c0_8 = arith.constant 0 : index
    %6 = vector.load %arg5[%c0_7, %c0_8] : memref<1x128xf32, #tpu.memory_space<vmem>>, vector<1x128xf32>
    %cst = arith.constant dense<0.000000e+00> : vector<24xf32>
    %7 = vector.multi_reduction <add>, %4, %cst [1] : vector<24x128xf32> to vector<24xf32>
    %8 = vector.shape_cast %7 : vector<24xf32> to vector<24x1xf32>
    %cst_9 = arith.constant 1.280000e+02 : f32
    %9 = vector.broadcast %cst_9 : f32 to vector<24x1xf32>
    %10 = arith.divf %8, %9 : vector<24x1xf32>
    %11 = vector.broadcast %10 : vector<24x1xf32> to vector<24x128xf32>
    %12 = arith.subf %4, %11 : vector<24x128xf32>
    %13 = vector.broadcast %10 : vector<24x1xf32> to vector<24x128xf32>
    %14 = arith.subf %4, %13 : vector<24x128xf32>
    %15 = arith.mulf %12, %14 : vector<24x128xf32>
    %cst_10 = arith.constant dense<0.000000e+00> : vector<24xf32>
    %16 = vector.multi_reduction <add>, %15, %cst_10 [1] : vector<24x128xf32> to vector<24xf32>
    %17 = vector.shape_cast %16 : vector<24xf32> to vector<24x1xf32>
    %cst_11 = arith.constant 1.280000e+02 : f32
    %18 = vector.broadcast %cst_11 : f32 to vector<24x1xf32>
    %19 = arith.divf %17, %18 : vector<24x1xf32>
    %20 = vector.broadcast %10 : vector<24x1xf32> to vector<24x128xf32>
    %21 = arith.subf %4, %20 : vector<24x128xf32>
    %cst_12 = arith.constant 9.99999974E-6 : f32
    %22 = vector.broadcast %cst_12 : f32 to vector<24x1xf32>
    %23 = arith.addf %19, %22 : vector<24x1xf32>
    %24 = math.rsqrt %23 : vector<24x1xf32>
    %25 = vector.broadcast %24 : vector<24x1xf32> to vector<24x128xf32>
    %26 = arith.mulf %21, %25 : vector<24x128xf32>
    %27 = vector.broadcast %5 : vector<1x128xf32> to vector<24x128xf32>
    %28 = arith.mulf %26, %27 : vector<24x128xf32>
    %29 = vector.broadcast %6 : vector<1x128xf32> to vector<24x128xf32>
    %30 = arith.addf %28, %29 : vector<24x128xf32>
    %31 = vector.extract_strided_slice %30 {offsets = [0, 0], sizes = [8, 128], strides = [1, 1]} : vector<24x128xf32> to vector<8x128xf32>
    %32 = vector.extract_strided_slice %30 {offsets = [8, 0], sizes = [16, 128], strides = [1, 1]} : vector<24x128xf32> to vector<16x128xf32>
    %33 = arith.truncf %31 : vector<8x128xf32> to vector<8x128xbf16>
    %c0_13 = arith.constant 0 : index
    %c0_14 = arith.constant 0 : index
    %34 = vector.load %arg6[%c0_13, %c0_14] : memref<128x128xbf16, #tpu.memory_space<vmem>>, vector<128x128xbf16>
    %cst_15 = arith.constant dense<0.000000e+00> : vector<8x128xf32>
    %35 = tpu.matmul %33, %34, %cst_15 {dimension_numbers = #tpu.dot_dimension_numbers<[1], [0], [0], [1], [0, 0, 1, 1], [], []>} : vector<8x128xbf16>, vector<128x128xbf16>, vector<8x128xf32> -> vector<8x128xf32>
    %36 = vector.shape_cast %35 : vector<8x128xf32> to vector<1x8x128xf32>
    %37 = arith.truncf %32 : vector<16x128xf32> to vector<16x128xbf16>
    %c0_16 = arith.constant 0 : index
    %c0_17 = arith.constant 0 : index
    %38 = vector.load %arg7[%c0_16, %c0_17] : memref<128x256xbf16, #tpu.memory_space<vmem>>, vector<128x256xbf16>
    %cst_18 = arith.constant dense<0.000000e+00> : vector<16x256xf32>
    %39 = tpu.matmul %37, %38, %cst_18 {dimension_numbers = #tpu.dot_dimension_numbers<[1], [0], [0], [1], [0, 0, 1, 1], [], []>} : vector<16x128xbf16>, vector<128x256xbf16>, vector<16x256xf32> -> vector<16x256xf32>
    %40 = vector.shape_cast %39 : vector<16x256xf32> to vector<1x16x256xf32>
    %c0_19 = arith.constant 0 : index
    %c0_20 = arith.constant 0 : index
    %41 = vector.load %arg3[%c0_19, %c0_20] : memref<128x256xf32, #tpu.memory_space<vmem>>, vector<128x256xf32>
    %42 = vector.shape_cast %40 : vector<1x16x256xf32> to vector<1x1x16x256xf32>
    %43 = vector.shape_cast %42 : vector<1x1x16x256xf32> to vector<1x1x16x256xf32>
    %44 = vector.broadcast %43 : vector<1x1x16x256xf32> to vector<1x8x16x256xf32>
    %45 = vector.shape_cast %44 : vector<1x8x16x256xf32> to vector<1x128x256xf32>
    %46 = vector.shape_cast %41 : vector<128x256xf32> to vector<1x128x256xf32>
    %47 = arith.mulf %45, %46 : vector<1x128x256xf32>
    %48 = arith.truncf %47 : vector<1x128x256xf32> to vector<1x128x256xbf16>
    %49 = vector.extract_strided_slice %48 {offsets = [0, 0, 0], sizes = [1, 128, 128], strides = [1, 1, 1]} : vector<1x128x256xbf16> to vector<1x128x128xbf16>
    %50 = vector.extract_strided_slice %48 {offsets = [0, 0, 128], sizes = [1, 128, 128], strides = [1, 1, 1]} : vector<1x128x256xbf16> to vector<1x128x128xbf16>
    %51 = arith.truncf %36 : vector<1x8x128xf32> to vector<1x8x128xbf16>
    "tpu.trace_start"() <{level = 10 : i32, message = "bqd,bkd->bqk"}> : () -> ()
    %cst_21 = arith.constant dense<0.000000e+00> : vector<1x8x128xf32>
    %52 = tpu.matmul %51, %49, %cst_21 {dimension_numbers = #tpu.dot_dimension_numbers<[2], [2], [1], [1], [0, 0, 0, 1, 1, 1], [0], [0]>} : vector<1x8x128xbf16>, vector<1x128x128xbf16>, vector<1x8x128xf32> -> vector<1x8x128xf32>
    "tpu.trace_stop"() : () -> ()
    %cst_22 = arith.constant dense<0xFF800000> : vector<1x8xf32>
    %53 = vector.multi_reduction <maximumf>, %52, %cst_22 [2] : vector<1x8x128xf32> to vector<1x8xf32>
    %54 = vector.shape_cast %53 : vector<1x8xf32> to vector<1x8x1xf32>
    %55 = vector.broadcast %54 : vector<1x8x1xf32> to vector<1x8x128xf32>
    %56 = arith.subf %52, %55 : vector<1x8x128xf32>
    %57 = math.exp %56 : vector<1x8x128xf32>
    %58 = arith.truncf %57 : vector<1x8x128xf32> to vector<1x8x128xbf16>
    "tpu.trace_start"() <{level = 10 : i32, message = "bqk,bkd->bqd"}> : () -> ()
    %cst_23 = arith.constant dense<0.000000e+00> : vector<1x8x128xf32>
    %59 = tpu.matmul %58, %50, %cst_23 {dimension_numbers = #tpu.dot_dimension_numbers<[2], [1], [1], [2], [0, 0, 0, 1, 1, 2], [0], [0]>} : vector<1x8x128xbf16>, vector<1x128x128xbf16>, vector<1x8x128xf32> -> vector<1x8x128xf32>
    "tpu.trace_stop"() : () -> ()
    %60 = vector.shape_cast %59 : vector<1x8x128xf32> to vector<8x128xf32>
    %61 = vector.shape_cast %58 : vector<1x8x128xbf16> to vector<8x128xbf16>
    %62 = vector.extract_strided_slice %41 {offsets = [0, 0], sizes = [128, 128], strides = [1, 1]} : vector<128x256xf32> to vector<128x128xf32>
    %63 = arith.truncf %62 : vector<128x128xf32> to vector<128x128xbf16>
    %cst_24 = arith.constant dense<0.000000e+00> : vector<8x128xf32>
    %64 = tpu.matmul %61, %63, %cst_24 {dimension_numbers = #tpu.dot_dimension_numbers<[1], [0], [0], [1], [0, 0, 1, 1], [], []>} : vector<8x128xbf16>, vector<128x128xbf16>, vector<8x128xf32> -> vector<8x128xf32>
    %cst_25 = arith.constant 1.000000e-30 : f32
    %65 = vector.broadcast %cst_25 : f32 to vector<8x128xf32>
    %66 = arith.maximumf %64, %65 : vector<8x128xf32>
    %67 = tpu.reciprocal %66 {approx = true} : vector<8x128xf32> -> vector<8x128xf32>
    %68 = arith.mulf %60, %67 : vector<8x128xf32>
    %69 = arith.truncf %68 : vector<8x128xf32> to vector<8x128xbf16>
    %c0_26 = arith.constant 0 : index
    %c0_27 = arith.constant 0 : index
    %70 = vector.load %arg8[%c0_26, %c0_27] : memref<128x128xbf16, #tpu.memory_space<vmem>>, vector<128x128xbf16>
    %cst_28 = arith.constant dense<0.000000e+00> : vector<8x128xf32>
    %71 = tpu.matmul %69, %70, %cst_28 {dimension_numbers = #tpu.dot_dimension_numbers<[1], [0], [0], [1], [0, 0, 1, 1], [], []>} : vector<8x128xbf16>, vector<128x128xbf16>, vector<8x128xf32> -> vector<8x128xf32>
    %72 = arith.addf %71, %1 : vector<8x128xf32>
    %c0_29 = arith.constant 0 : index
    %c0_30 = arith.constant 0 : index
    %73 = vector.load %arg9[%c0_29, %c0_30] : memref<1x128xf32, #tpu.memory_space<vmem>>, vector<1x128xf32>
    %c0_31 = arith.constant 0 : index
    %c0_32 = arith.constant 0 : index
    %74 = vector.load %arg10[%c0_31, %c0_32] : memref<1x128xf32, #tpu.memory_space<vmem>>, vector<1x128xf32>
    %cst_33 = arith.constant dense<0.000000e+00> : vector<8xf32>
    %75 = vector.multi_reduction <add>, %72, %cst_33 [1] : vector<8x128xf32> to vector<8xf32>
    %76 = vector.shape_cast %75 : vector<8xf32> to vector<8x1xf32>
    %cst_34 = arith.constant 1.280000e+02 : f32
    %77 = vector.broadcast %cst_34 : f32 to vector<8x1xf32>
    %78 = arith.divf %76, %77 : vector<8x1xf32>
    %79 = vector.broadcast %78 : vector<8x1xf32> to vector<8x128xf32>
    %80 = arith.subf %72, %79 : vector<8x128xf32>
    %81 = vector.broadcast %78 : vector<8x1xf32> to vector<8x128xf32>
    %82 = arith.subf %72, %81 : vector<8x128xf32>
    %83 = arith.mulf %80, %82 : vector<8x128xf32>
    %cst_35 = arith.constant dense<0.000000e+00> : vector<8xf32>
    %84 = vector.multi_reduction <add>, %83, %cst_35 [1] : vector<8x128xf32> to vector<8xf32>
    %85 = vector.shape_cast %84 : vector<8xf32> to vector<8x1xf32>
    %cst_36 = arith.constant 1.280000e+02 : f32
    %86 = vector.broadcast %cst_36 : f32 to vector<8x1xf32>
    %87 = arith.divf %85, %86 : vector<8x1xf32>
    %88 = vector.broadcast %78 : vector<8x1xf32> to vector<8x128xf32>
    %89 = arith.subf %72, %88 : vector<8x128xf32>
    %cst_37 = arith.constant 9.99999974E-6 : f32
    %90 = vector.broadcast %cst_37 : f32 to vector<8x1xf32>
    %91 = arith.addf %87, %90 : vector<8x1xf32>
    %92 = math.rsqrt %91 : vector<8x1xf32>
    %93 = vector.broadcast %92 : vector<8x1xf32> to vector<8x128xf32>
    %94 = arith.mulf %89, %93 : vector<8x128xf32>
    %95 = vector.broadcast %73 : vector<1x128xf32> to vector<8x128xf32>
    %96 = arith.mulf %94, %95 : vector<8x128xf32>
    %97 = vector.broadcast %74 : vector<1x128xf32> to vector<8x128xf32>
    %98 = arith.addf %96, %97 : vector<8x128xf32>
    %99 = arith.truncf %98 : vector<8x128xf32> to vector<8x128xbf16>
    %c0_38 = arith.constant 0 : index
    %c0_39 = arith.constant 0 : index
    %100 = vector.load %arg11[%c0_38, %c0_39] : memref<128x512xbf16, #tpu.memory_space<vmem>>, vector<128x512xbf16>
    %cst_40 = arith.constant dense<0.000000e+00> : vector<8x512xf32>
    %101 = tpu.matmul %99, %100, %cst_40 {dimension_numbers = #tpu.dot_dimension_numbers<[1], [0], [0], [1], [0, 0, 1, 1], [], []>} : vector<8x128xbf16>, vector<128x512xbf16>, vector<8x512xf32> -> vector<8x512xf32>
    %c0_41 = arith.constant 0 : index
    %c0_42 = arith.constant 0 : index
    %102 = vector.load %arg12[%c0_41, %c0_42] : memref<1x512xf32, #tpu.memory_space<vmem>>, vector<1x512xf32>
    %103 = vector.broadcast %102 : vector<1x512xf32> to vector<8x512xf32>
    %104 = arith.addf %101, %103 : vector<8x512xf32>
    %cst_43 = arith.constant 0.000000e+00 : f32
    %105 = vector.broadcast %cst_43 : f32 to vector<8x512xf32>
    %106 = arith.maximumf %104, %105 : vector<8x512xf32>
    %107 = arith.truncf %106 : vector<8x512xf32> to vector<8x512xbf16>
    %c0_44 = arith.constant 0 : index
    %c0_45 = arith.constant 0 : index
    %108 = vector.load %arg13[%c0_44, %c0_45] : memref<512x128xbf16, #tpu.memory_space<vmem>>, vector<512x128xbf16>
    %cst_46 = arith.constant dense<0.000000e+00> : vector<8x128xf32>
    %109 = tpu.matmul %107, %108, %cst_46 {dimension_numbers = #tpu.dot_dimension_numbers<[1], [0], [0], [1], [0, 0, 1, 1], [], []>} : vector<8x512xbf16>, vector<512x128xbf16>, vector<8x128xf32> -> vector<8x128xf32>
    %c0_47 = arith.constant 0 : index
    %c0_48 = arith.constant 0 : index
    %110 = vector.load %arg14[%c0_47, %c0_48] : memref<1x128xf32, #tpu.memory_space<vmem>>, vector<1x128xf32>
    %111 = vector.broadcast %110 : vector<1x128xf32> to vector<8x128xf32>
    %112 = arith.addf %109, %111 : vector<8x128xf32>
    %113 = arith.addf %112, %72 : vector<8x128xf32>
    %114 = vector.shape_cast %113 : vector<8x128xf32> to vector<1x8x128xf32>
    %c0_49 = arith.constant 0 : index
    %c0_50 = arith.constant 0 : index
    %c0_51 = arith.constant 0 : index
    %115 = vector.load %arg15[%c0_49, %c0_50, %c0_51] : memref<1x8x128xf32, #tpu.memory_space<vmem>>, vector<1x8x128xf32>
    tpu.vector_store %arg15[%c0_49, %c0_50, %c0_51], %114 {strides = array<i32>} : memref<1x8x128xf32, #tpu.memory_space<vmem>>, vector<1x8x128xf32>,
    return
  }
  func.func @transform_0(%arg0: i32) -> (i32, i32, i32) {
    %c0_i32 = arith.constant 0 : i32
    %c0_i32_0 = arith.constant 0 : i32
    %c0_i32_1 = arith.constant 0 : i32
    return %arg0, %c0_i32, %c0_i32_0 : i32, i32, i32
  }
  func.func @transform_1(%arg0: i32) -> (i32, i32, i32) {
    %c0_i32 = arith.constant 0 : i32
    %c0_i32_0 = arith.constant 0 : i32
    %c0_i32_1 = arith.constant 0 : i32
    return %arg0, %c0_i32, %c0_i32_0 : i32, i32, i32
  }
  func.func @transform_2(%arg0: i32) -> (i32, i32) {
    %c0_i32 = arith.constant 0 : i32
    %c0_i32_0 = arith.constant 0 : i32
    %c0_i32_1 = arith.constant 0 : i32
    return %c0_i32, %c0_i32_0 : i32, i32
  }
  func.func @transform_3(%arg0: i32) -> (i32, i32) {
    %c0_i32 = arith.constant 0 : i32
    %c0_i32_0 = arith.constant 0 : i32
    %c0_i32_1 = arith.constant 0 : i32
    return %c0_i32, %c0_i32_0 : i32, i32
  }
  func.func @transform_4(%arg0: i32) -> (i32, i32) {
    %c0_i32 = arith.constant 0 : i32
    %c0_i32_0 = arith.constant 0 : i32
    %c0_i32_1 = arith.constant 0 : i32
    return %c0_i32, %c0_i32_0 : i32, i32
  }
  func.func @transform_5(%arg0: i32) -> (i32, i32) {
    %c0_i32 = arith.constant 0 : i32
    %c0_i32_0 = arith.constant 0 : i32
    %c0_i32_1 = arith.constant 0 : i32
    return %c0_i32, %c0_i32_0 : i32, i32
  }
  func.func @transform_6(%arg0: i32) -> (i32, i32) {
    %c0_i32 = arith.constant 0 : i32
    %c0_i32_0 = arith.constant 0 : i32
    %c0_i32_1 = arith.constant 0 : i32
    return %c0_i32, %c0_i32_0 : i32, i32
  }
  func.func @transform_7(%arg0: i32) -> (i32, i32) {
    %c0_i32 = arith.constant 0 : i32
    %c0_i32_0 = arith.constant 0 : i32
    %c0_i32_1 = arith.constant 0 : i32
    return %c0_i32, %c0_i32_0 : i32, i32
  }
  func.func @transform_8(%arg0: i32) -> (i32, i32) {
    %c0_i32 = arith.constant 0 : i32
    %c0_i32_0 = arith.constant 0 : i32
    %c0_i32_1 = arith.constant 0 : i32
    return %c0_i32, %c0_i32_0 : i32, i32
  }
  func.func @transform_9(%arg0: i32) -> (i32, i32) {
    %c0_i32 = arith.constant 0 : i32
    %c0_i32_0 = arith.constant 0 : i32
    %c0_i32_1 = arith.constant 0 : i32
    return %c0_i32, %c0_i32_0 : i32, i32
  }
  func.func @transform_10(%arg0: i32) -> (i32, i32) {
    %c0_i32 = arith.constant 0 : i32
    %c0_i32_0 = arith.constant 0 : i32
    %c0_i32_1 = arith.constant 0 : i32
    return %c0_i32, %c0_i32_0 : i32, i32
  }
  func.func @transform_11(%arg0: i32) -> (i32, i32) {
    %c0_i32 = arith.constant 0 : i32
    %c0_i32_0 = arith.constant 0 : i32
    %c0_i32_1 = arith.constant 0 : i32
    return %c0_i32, %c0_i32_0 : i32, i32
  }
  func.func @transform_12(%arg0: i32) -> (i32, i32) {
    %c0_i32 = arith.constant 0 : i32
    %c0_i32_0 = arith.constant 0 : i32
    %c0_i32_1 = arith.constant 0 : i32
    return %c0_i32, %c0_i32_0 : i32, i32
  }
  func.func @transform_13(%arg0: i32) -> (i32, i32) {
    %c0_i32 = arith.constant 0 : i32
    %c0_i32_0 = arith.constant 0 : i32
    %c0_i32_1 = arith.constant 0 : i32
    return %c0_i32, %c0_i32_0 : i32, i32
  }
  func.func @transform_14(%arg0: i32) -> (i32, i32, i32) {
    %c0_i32 = arith.constant 0 : i32
    %c0_i32_0 = arith.constant 0 : i32
    %c0_i32_1 = arith.constant 0 : i32
    return %arg0, %c0_i32, %c0_i32_0 : i32, i32, i32
  }
}

</mosaic_0001>

<llo_original>
// kernel: decoder_forward.1
$region0: #{decoder_forward.1}
  #allocation0 [shape = 'u32[]', space=smem, size = 0x4, offset = 0x4, fixed_abs, tag = 'smem constant byte address 0x4 - core index']
  #allocation1 [shape = 'u32[72,128]{1,0:T(1,128)}', space=vmem, size = 0x9000, scoped, tag = 'internal scratch']
  %s0 = inlined_call_operand.hbm [shape: f32[2,8,128], index: 0, kind: input, shape index: {}]
  %s1 = inlined_call_operand.hbm [shape: f32[2,16,128], index: 1, kind: input, shape index: {}]
  %s2 = inlined_call_operand.hbm [shape: f32[128,256], index: 2, kind: input, shape index: {}]
  %s3 = inlined_call_operand.vmem [shape: f32[1,128], index: 3, kind: input, shape index: {}]
  %s4 = inlined_call_operand.vmem [shape: f32[1,128], index: 4, kind: input, shape index: {}]
  %s5 = inlined_call_operand.hbm [shape: bf16[128,128], index: 5, kind: input, shape index: {}]
  %s6 = inlined_call_operand.hbm [shape: bf16[128,256], index: 6, kind: input, shape index: {}]
  %s7 = inlined_call_operand.hbm [shape: bf16[128,128], index: 7, kind: input, shape index: {}]
  %s8 = inlined_call_operand.vmem [shape: f32[1,128], index: 8, kind: input, shape index: {}]
  %s9 = inlined_call_operand.vmem [shape: f32[1,128], index: 9, kind: input, shape index: {}]
  %s10 = inlined_call_operand.hbm [shape: bf16[128,512], index: 10, kind: input, shape index: {}]
  %s11 = inlined_call_operand.hbm [shape: f32[1,512], index: 11, kind: input, shape index: {}]
  %s12 = inlined_call_operand.hbm [shape: bf16[512,128], index: 12, kind: input, shape index: {}]
  %s13 = inlined_call_operand.hbm [shape: f32[1,128], index: 13, kind: input, shape index: {}]
  %s14 = inlined_call_operand.hbm [shape: f32[2,8,128], index: 14, kind: output, shape index: {}]
  %s15 = sld [smem:[#allocation0]]
  $region129: #{decoder_forward.1} parent=0
    _
  %s17 = ssub.s32 1, %s15
  %s18 = scalar_select 0, %s17, %s15
  $region1: #{decoder_forward.1} parent=0
    #allocation2 [shape = 'u8[8192]{0}', space=vmem, size = 0x2000, scoped, tag = 'input window, operand 0']
    #allocation3 [shape = 's32[2]{0}', space=sflag, size = 0x8, scoped, tag = 'scoped memory for decoder_forward.1']
    #allocation4 [shape = 's32[2]{0}', space=sflag, size = 0x8, scoped, tag = 'scoped memory for decoder_forward.1']
    #allocation5 [shape = 'u8[16384]{0}', space=vmem, size = 0x4000, scoped, tag = 'input window, operand 1']
    #allocation6 [shape = 's32[2]{0}', space=sflag, size = 0x8, scoped, tag = 'scoped memory for decoder_forward.1']
    #allocation7 [shape = 'u8[131072]{0}', space=vmem, size = 0x20000, scoped, tag = 'input window, operand 2, single buffered']
    #allocation8 [shape = 'u8[32768]{0}', space=vmem, size = 0x8000, scoped, tag = 'input window, operand 5, single buffered']
    #allocation9 [shape = 's32[1]{0}', space=sflag, size = 0x4, scoped, tag = 'scoped memory for decoder_forward.1']
    #allocation10 [shape = 'u8[65536]{0}', space=vmem, size = 0x10000, scoped, tag = 'input window, operand 6, single buffered']
    #allocation11 [shape = 'u8[32768]{0}', space=vmem, size = 0x8000, scoped, tag = 'input window, operand 7, single buffered']
    #allocation12 [shape = 's32[1]{0}', space=sflag, size = 0x4, scoped, tag = 'scoped memory for decoder_forward.1']
    #allocation13 [shape = 'u8[131072]{0}', space=vmem, size = 0x20000, scoped, tag = 'input window, operand 10, single buffered']
    #allocation14 [shape = 'u8[2048]{0}', space=vmem, size = 0x800, scoped, tag = 'input window, operand 11, single buffered']
    #allocation15 [shape = 's32[1]{0}', space=sflag, size = 0x4, scoped, tag = 'scoped memory for decoder_forward.1']
    #allocation16 [shape = 'u8[131072]{0}', space=vmem, size = 0x20000, scoped, tag = 'input window, operand 12, single buffered']
    #allocation17 [shape = 'u8[512]{0}', space=vmem, size = 0x400, scoped, tag = 'input window, operand 13, single buffered']
    #allocation18 [shape = 's32[1]{0}', space=sflag, size = 0x4, scoped, tag = 'scoped memory for decoder_forward.1']
    #allocation19 [shape = 'u8[8192]{0}', space=vmem, size = 0x2000, scoped, tag = 'output window, operand 0']
    %19 = vsyncpa [#allocation3], 0
    %s20 = scalar_lea.sflag [#allocation3], 1
    %21 = vsyncpa %s20, 0
    %22 = vsyncpa [#allocation6], 0
    %s23 = scalar_lea.sflag [#allocation6], 1
    %24 = vsyncpa %s23, 0
    %25 = vsyncpa [#allocation9], 0
    %26 = vsyncpa [#allocation12], 0
    %27 = vsyncpa [#allocation15], 0
    %28 = vsyncpa [#allocation18], 0
    %29 = vsyncpa [#allocation4], 0
    %s30 = scalar_lea.sflag [#allocation4], 1
    %31 = vsyncpa %s30, 0
    loop: start=0, step=1, limit=4
    $region2: #{decoder_forward.1} parent=1 // loop_pre_header
      _
    $region3: #{decoder_forward.1} parent=1 // loop_header
      %s33 = sphi 0, %s37
      %p34 = scmp.ge.s32.totalorder %s33, 4
      %s43 = sphi 0, %s45
      %s46 = sphi 0, %s43
      %s47 = sphi 0, %s46
      %s63 = sphi 0, %s47
      %s69 = sphi 0, %s71
      %s72 = sphi 0, %s69
      %s73 = sphi 0, %s72
      %s89 = sphi 0, %s73
      %s93 = sphi 0, %s93
      %s95 = sphi 0, %s93
      %s96 = sphi 0, %s95
      %s110 = sphi 0, %s96
      %s114 = sphi 0, %s114
      %s116 = sphi 0, %s114
      %s117 = sphi 0, %s116
      %s131 = sphi 0, %s117
      %s135 = sphi 0, %s135
      %s137 = sphi 0, %s135
      %s138 = sphi 0, %s137
      %s152 = sphi 0, %s138
      %s156 = sphi 0, %s156
      %s158 = sphi 0, %s156
      %s159 = sphi 0, %s158
      %s173 = sphi 0, %s159
      %s177 = sphi 0, %s177
      %s179 = sphi 0, %s177
      %s180 = sphi 0, %s179
      %s194 = sphi 0, %s180
      %s198 = sphi 0, %s198
      %s200 = sphi 0, %s198
      %s201 = sphi 0, %s200
      %s215 = sphi 0, %s201
      %s219 = sphi 0, %s219
      %s221 = sphi 0, %s219
      %s222 = sphi 0, %s221
      %s236 = sphi 0, %s222
      %s240 = sphi 0, %s240
      %s242 = sphi 0, %s240
      %s243 = sphi 0, %s242
      %s257 = sphi 0, %s243
      %s261 = sphi 0, %s261
      %s263 = sphi 0, %s261
      %s264 = sphi 0, %s263
      %s278 = sphi 0, %s264
      %s282 = sphi 0, %s282
      %s284 = sphi 0, %s282
      %s285 = sphi 0, %s284
      %s299 = sphi 0, %s285
      %s303 = sphi 0, %s303
      %s305 = sphi 0, %s303
      %s306 = sphi 0, %s305
      %s320 = sphi 0, %s306
      %s324 = sphi 0, %s324
      %s326 = sphi 0, %s324
      %s327 = sphi 0, %s326
      %s341 = sphi 0, %s327
      %s347 = sphi 0, %s349
      %s350 = sphi 0, %s347
      %s351 = sphi 0, %s350
      %s367 = sphi 0, %s351
    $region4: #{decoder_forward.1} parent=1 // loop_header_branch
      %36 = sbr.rel (%p34) target = $region8
    $region5: #{decoder_forward.1} parent=1 // loop_body
      %s38 = ssub.s32 %s33, 1
      %s39 = ssub.s32 %s33, 2
      %s40 = sadd.s32 %s33, 1
      %s41 = ssub.s32 %s33, %s40
      %p42 = scmp.eq.s32.totalorder %s41, 0
      %s44 = sadd.s32 %s43, 1
      %s45 = scalar_select %p42, %s43, %s44
      %p48 = pneg %p42
      %p49 = scmp.eq.s32.totalorder %s33, 1
      %p50 = por %p48, %p49
      %p51 = scmp.ne.s32.totalorder %s43, %s46
      %p52 = scmp.eq.s32.totalorder %s33, 0
      %p53 = por %p51, %p52
      %p54 = scmp.ne.s32.totalorder %s43, %s46
      %p55 = scmp.eq.s32.totalorder %s38, 1
      %p56 = por %p54, %p55
      %p57 = scmp.ne.s32.totalorder %s46, %s47
      %p58 = scmp.eq.s32.totalorder %s38, 0
      %p59 = por %p57, %p58
      %p60 = scmp.ne.s32.totalorder %s46, %s47
      %p61 = scmp.eq.s32.totalorder %s39, 1
      %p62 = por %p60, %p61
      %p64 = scmp.ne.s32.totalorder %s47, %s63
      %p65 = scmp.eq.s32.totalorder %s39, 0
      %p66 = por %p64, %p65
      %s67 = ssub.s32 %s33, %s40
      %p68 = scmp.eq.s32.totalorder %s67, 0
      %s70 = sadd.s32 %s69, 1
      %s71 = scalar_select %p68, %s69, %s70
      %p74 = pneg %p68
      %p75 = scmp.eq.s32.totalorder %s33, 1
      %p76 = por %p74, %p75
      %p77 = scmp.ne.s32.totalorder %s69, %s72
      %p78 = scmp.eq.s32.totalorder %s33, 0
      %p79 = por %p77, %p78
      %p80 = scmp.ne.s32.totalorder %s69, %s72
      %p81 = scmp.eq.s32.totalorder %s38, 1
      %p82 = por %p80, %p81
      %p83 = scmp.ne.s32.totalorder %s72, %s73
      %p84 = scmp.eq.s32.totalorder %s38, 0
      %p85 = por %p83, %p84
      %p86 = scmp.ne.s32.totalorder %s72, %s73
      %p87 = scmp.eq.s32.totalorder %s39, 1
      %p88 = por %p86, %p87
      %p90 = scmp.ne.s32.totalorder %s73, %s89
      %p91 = scmp.eq.s32.totalorder %s39, 0
      %p92 = por %p90, %p91
      %s94 = sadd.s32 %s93, 1
      %p97 = scmp.eq.s32.totalorder %s33, 1
      %p98 = scmp.ne.s32.totalorder %s93, %s95
      %p99 = scmp.eq.s32.totalorder %s33, 0
      %p100 = por %p98, %p99
      %p101 = scmp.ne.s32.totalorder %s93, %s95
      %p102 = scmp.eq.s32.totalorder %s38, 1
      %p103 = por %p101, %p102
      %p104 = scmp.ne.s32.totalorder %s95, %s96
      %p105 = scmp.eq.s32.totalorder %s38, 0
      %p106 = por %p104, %p105
      %p107 = scmp.ne.s32.totalorder %s95, %s96
      %p108 = scmp.eq.s32.totalorder %s39, 1
      %p109 = por %p107, %p108
      %p111 = scmp.ne.s32.totalorder %s96, %s110
      %p112 = scmp.eq.s32.totalorder %s39, 0
      %p113 = por %p111, %p112
      %s115 = sadd.s32 %s114, 1
      %p118 = scmp.eq.s32.totalorder %s33, 1
      %p119 = scmp.ne.s32.totalorder %s114, %s116
      %p120 = scmp.eq.s32.totalorder %s33, 0
      %p121 = por %p119, %p120
      %p122 = scmp.ne.s32.totalorder %s114, %s116
      %p123 = scmp.eq.s32.totalorder %s38, 1
      %p124 = por %p122, %p123
      %p125 = scmp.ne.s32.totalorder %s116, %s117
      %p126 = scmp.eq.s32.totalorder %s38, 0
      %p127 = por %p125, %p126
      %p128 = scmp.ne.s32.totalorder %s116, %s117
      %p129 = scmp.eq.s32.totalorder %s39, 1
      %p130 = por %p128, %p129
      %p132 = scmp.ne.s32.totalorder %s117, %s131
      %p133 = scmp.eq.s32.totalorder %s39, 0
      %p134 = por %p132, %p133
      %s136 = sadd.s32 %s135, 1
      %p139 = scmp.eq.s32.totalorder %s33, 1
      %p140 = scmp.ne.s32.totalorder %s135, %s137
      %p141 = scmp.eq.s32.totalorder %s33, 0
      %p142 = por %p140, %p141
      %p143 = scmp.ne.s32.totalorder %s135, %s137
      %p144 = scmp.eq.s32.totalorder %s38, 1
      %p145 = por %p143, %p144
      %p146 = scmp.ne.s32.totalorder %s137, %s138
      %p147 = scmp.eq.s32.totalorder %s38, 0
      %p148 = por %p146, %p147
      %p149 = scmp.ne.s32.totalorder %s137, %s138
      %p150 = scmp.eq.s32.totalorder %s39, 1
      %p151 = por %p149, %p150
      %p153 = scmp.ne.s32.totalorder %s138, %s152
      %p154 = scmp.eq.s32.totalorder %s39, 0
      %p155 = por %p153, %p154
      %s157 = sadd.s32 %s156, 1
      %p160 = scmp.eq.s32.totalorder %s33, 1
      %p161 = scmp.ne.s32.totalorder %s156, %s158
      %p162 = scmp.eq.s32.totalorder %s33, 0
      %p163 = por %p161, %p162
      %p164 = scmp.ne.s32.totalorder %s156, %s158
      %p165 = scmp.eq.s32.totalorder %s38, 1
      %p166 = por %p164, %p165
      %p167 = scmp.ne.s32.totalorder %s158, %s159
      %p168 = scmp.eq.s32.totalorder %s38, 0
      %p169 = por %p167, %p168
      %p170 = scmp.ne.s32.totalorder %s158, %s159
      %p171 = scmp.eq.s32.totalorder %s39, 1
      %p172 = por %p170, %p171
      %p174 = scmp.ne.s32.totalorder %s159, %s173
      %p175 = scmp.eq.s32.totalorder %s39, 0
      %p176 = por %p174, %p175
      %s178 = sadd.s32 %s177, 1
      %p181 = scmp.eq.s32.totalorder %s33, 1
      %p182 = scmp.ne.s32.totalorder %s177, %s179
      %p183 = scmp.eq.s32.totalorder %s33, 0
      %p184 = por %p182, %p183
      %p185 = scmp.ne.s32.totalorder %s177, %s179
      %p186 = scmp.eq.s32.totalorder %s38, 1
      %p187 = por %p185, %p186
      %p188 = scmp.ne.s32.totalorder %s179, %s180
      %p189 = scmp.eq.s32.totalorder %s38, 0
      %p190 = por %p188, %p189
      %p191 = scmp.ne.s32.totalorder %s179, %s180
      %p192 = scmp.eq.s32.totalorder %s39, 1
      %p193 = por %p191, %p192
      %p195 = scmp.ne.s32.totalorder %s180, %s194
      %p196 = scmp.eq.s32.totalorder %s39, 0
      %p197 = por %p195, %p196
      %s199 = sadd.s32 %s198, 1
      %p202 = scmp.eq.s32.totalorder %s33, 1
      %p203 = scmp.ne.s32.totalorder %s198, %s200
      %p204 = scmp.eq.s32.totalorder %s33, 0
      %p205 = por %p203, %p204
      %p206 = scmp.ne.s32.totalorder %s198, %s200
      %p207 = scmp.eq.s32.totalorder %s38, 1
      %p208 = por %p206, %p207
      %p209 = scmp.ne.s32.totalorder %s200, %s201
      %p210 = scmp.eq.s32.totalorder %s38, 0
      %p211 = por %p209, %p210
      %p212 = scmp.ne.s32.totalorder %s200, %s201
      %p213 = scmp.eq.s32.totalorder %s39, 1
      %p214 = por %p212, %p213
      %p216 = scmp.ne.s32.totalorder %s201, %s215
      %p217 = scmp.eq.s32.totalorder %s39, 0
      %p218 = por %p216, %p217
      %s220 = sadd.s32 %s219, 1
      %p223 = scmp.eq.s32.totalorder %s33, 1
      %p224 = scmp.ne.s32.totalorder %s219, %s221
      %p225 = scmp.eq.s32.totalorder %s33, 0
      %p226 = por %p224, %p225
      %p227 = scmp.ne.s32.totalorder %s219, %s221
      %p228 = scmp.eq.s32.totalorder %s38, 1
      %p229 = por %p227, %p228
      %p230 = scmp.ne.s32.totalorder %s221, %s222
      %p231 = scmp.eq.s32.totalorder %s38, 0
      %p232 = por %p230, %p231
      %p233 = scmp.ne.s32.totalorder %s221, %s222
      %p234 = scmp.eq.s32.totalorder %s39, 1
      %p235 = por %p233, %p234
      %p237 = scmp.ne.s32.totalorder %s222, %s236
      %p238 = scmp.eq.s32.totalorder %s39, 0
      %p239 = por %p237, %p238
      %s241 = sadd.s32 %s240, 1
      %p244 = scmp.eq.s32.totalorder %s33, 1
      %p245 = scmp.ne.s32.totalorder %s240, %s242
      %p246 = scmp.eq.s32.totalorder %s33, 0
      %p247 = por %p245, %p246
      %p248 = scmp.ne.s32.totalorder %s240, %s242
      %p249 = scmp.eq.s32.totalorder %s38, 1
      %p250 = por %p248, %p249
      %p251 = scmp.ne.s32.totalorder %s242, %s243
      %p252 = scmp.eq.s32.totalorder %s38, 0
      %p253 = por %p251, %p252
      %p254 = scmp.ne.s32.totalorder %s242, %s243
      %p255 = scmp.eq.s32.totalorder %s39, 1
      %p256 = por %p254, %p255
      %p258 = scmp.ne.s32.totalorder %s243, %s257
      %p259 = scmp.eq.s32.totalorder %s39, 0
      %p260 = por %p258, %p259
      %s262 = sadd.s32 %s261, 1
      %p265 = scmp.eq.s32.totalorder %s33, 1
      %p266 = scmp.ne.s32.totalorder %s261, %s263
      %p267 = scmp.eq.s32.totalorder %s33, 0
      %p268 = por %p266, %p267
      %p269 = scmp.ne.s32.totalorder %s261, %s263
      %p270 = scmp.eq.s32.totalorder %s38, 1
      %p271 = por %p269, %p270
      %p272 = scmp.ne.s32.totalorder %s263, %s264
      %p273 = scmp.eq.s32.totalorder %s38, 0
      %p274 = por %p272, %p273
      %p275 = scmp.ne.s32.totalorder %s263, %s264
      %p276 = scmp.eq.s32.totalorder %s39, 1
      %p277 = por %p275, %p276
      %p279 = scmp.ne.s32.totalorder %s264, %s278
      %p280 = scmp.eq.s32.totalorder %s39, 0
      %p281 = por %p279, %p280
      %s283 = sadd.s32 %s282, 1
      %p286 = scmp.eq.s32.totalorder %s33, 1
      %p287 = scmp.ne.s32.totalorder %s282, %s284
      %p288 = scmp.eq.s32.totalorder %s33, 0
      %p289 = por %p287, %p288
      %p290 = scmp.ne.s32.totalorder %s282, %s284
      %p291 = scmp.eq.s32.totalorder %s38, 1
      %p292 = por %p290, %p291
      %p293 = scmp.ne.s32.totalorder %s284, %s285
      %p294 = scmp.eq.s32.totalorder %s38, 0
      %p295 = por %p293, %p294
      %p296 = scmp.ne.s32.totalorder %s284, %s285
      %p297 = scmp.eq.s32.totalorder %s39, 1
      %p298 = por %p296, %p297
      %p300 = scmp.ne.s32.totalorder %s285, %s299
      %p301 = scmp.eq.s32.totalorder %s39, 0
      %p302 = por %p300, %p301
      %s304 = sadd.s32 %s303, 1
      %p307 = scmp.eq.s32.totalorder %s33, 1
      %p308 = scmp.ne.s32.totalorder %s303, %s305
      %p309 = scmp.eq.s32.totalorder %s33, 0
      %p310 = por %p308, %p309
      %p311 = scmp.ne.s32.totalorder %s303, %s305
      %p312 = scmp.eq.s32.totalorder %s38, 1
      %p313 = por %p311, %p312
      %p314 = scmp.ne.s32.totalorder %s305, %s306
      %p315 = scmp.eq.s32.totalorder %s38, 0
      %p316 = por %p314, %p315
      %p317 = scmp.ne.s32.totalorder %s305, %s306
      %p318 = scmp.eq.s32.totalorder %s39, 1
      %p319 = por %p317, %p318
      %p321 = scmp.ne.s32.totalorder %s306, %s320
      %p322 = scmp.eq.s32.totalorder %s39, 0
      %p323 = por %p321, %p322
      %s325 = sadd.s32 %s324, 1
      %p328 = scmp.eq.s32.totalorder %s33, 1
      %p329 = scmp.ne.s32.totalorder %s324, %s326
      %p330 = scmp.eq.s32.totalorder %s33, 0
      %p331 = por %p329, %p330
      %p332 = scmp.ne.s32.totalorder %s324, %s326
      %p333 = scmp.eq.s32.totalorder %s38, 1
      %p334 = por %p332, %p333
      %p335 = scmp.ne.s32.totalorder %s326, %s327
      %p336 = scmp.eq.s32.totalorder %s38, 0
      %p337 = por %p335, %p336
      %p338 = scmp.ne.s32.totalorder %s326, %s327
      %p339 = scmp.eq.s32.totalorder %s39, 1
      %p340 = por %p338, %p339
      %p342 = scmp.ne.s32.totalorder %s327, %s341
      %p343 = scmp.eq.s32.totalorder %s39, 0
      %p344 = por %p342, %p343
      %s345 = ssub.s32 %s33, %s40
      %p346 = scmp.eq.s32.totalorder %s345, 0
      %s348 = sadd.s32 %s347, 1
      %s349 = scalar_select %p346, %s347, %s348
      %p352 = pneg %p346
      %p353 = scmp.eq.s32.totalorder %s33, 1
      %p354 = por %p352, %p353
      %p355 = scmp.ne.s32.totalorder %s347, %s350
      %p356 = scmp.eq.s32.totalorder %s33, 0
      %p357 = por %p355, %p356
      %p358 = scmp.ne.s32.totalorder %s347, %s350
      %p359 = scmp.eq.s32.totalorder %s38, 1
      %p360 = por %p358, %p359
      %p361 = scmp.ne.s32.totalorder %s350, %s351
      %p362 = scmp.eq.s32.totalorder %s38, 0
      %p363 = por %p361, %p362
      %p364 = scmp.ne.s32.totalorder %s350, %s351
      %p365 = scmp.eq.s32.totalorder %s39, 1
      %p366 = por %p364, %p365
      %p368 = scmp.ne.s32.totalorder %s351, %s367
      %p369 = scmp.eq.s32.totalorder %s39, 0
      %p370 = por %p368, %p369
      %p371 = scmp.le.s32.totalorder 1, %s33
      %p372 = scmp.lt.s32.totalorder %s33, 3
      %p373 = pnand %p371, %p372
      %p374 = pneg %p373
      // Predicated region
      $region9: #{decoder_forward.1} parent=5 // pred_check
        _
      $region10: #{decoder_forward.1} parent=5 // pred_check_branch
        %376 = sbr.rel (%p373) target = $region12
      $region11: #{decoder_forward.1} parent=5 // pred_region
        %s377 = ssub.s32 %s33, 1
        // Predicated region
        $region13: #{decoder_forward.1} parent=11 // pred_check
          %p378 = pneg %p106
        $region14: #{decoder_forward.1} parent=11 // pred_check_branch
          %380 = sbr.rel (%p378) target = $region16
        $region15: #{decoder_forward.1} parent=11 // pred_region
          %382 = vsyncadd [#allocation6], 0
          %s383 = sshll.u32 %s2, 4
          %s384 = int_to_ptr.hbm [resolvable:$true] %s383
          %s385 = sshll.u32 [#allocation7], 4
          %s386 = int_to_ptr.vmem [resolvable:$true] %s385
          %391 = dma.hbm_to_vmem [thread:$0]  %s384, 4096, %s386, [#allocation6], 256, 256, 16
        $region16: #{decoder_forward.1} parent=11 // pred_fallthru
          _
        // Predicated region
        $region17: #{decoder_forward.1} parent=11 // pred_check
          %p392 = pneg %p127
        $region18: #{decoder_forward.1} parent=11 // pred_check_branch
          %394 = sbr.rel (%p392) target = $region20
        $region19: #{decoder_forward.1} parent=11 // pred_region
          _
        $region20: #{decoder_forward.1} parent=11 // pred_fallthru
          _
        // Predicated region
        $region21: #{decoder_forward.1} parent=11 // pred_check
          %p395 = pneg %p148
        $region22: #{decoder_forward.1} parent=11 // pred_check_branch
          %397 = sbr.rel (%p395) target = $region24
        $region23: #{decoder_forward.1} parent=11 // pred_region
          _
        $region24: #{decoder_forward.1} parent=11 // pred_fallthru
          _
        // Predicated region
        $region25: #{decoder_forward.1} parent=11 // pred_check
          %p398 = pneg %p169
        $region26: #{decoder_forward.1} parent=11 // pred_check_branch
          %400 = sbr.rel (%p398) target = $region28
        $region27: #{decoder_forward.1} parent=11 // pred_region
          %402 = vsyncadd [#allocation9], 0
          %s403 = sshll.u32 %s5, 4
          %s404 = int_to_ptr.hbm [resolvable:$true] %s403
          %s405 = sshll.u32 [#allocation8], 4
          %s406 = int_to_ptr.vmem [resolvable:$true] %s405
          %411 = dma.hbm_to_vmem [thread:$0]  %s404, 1024, %s406, [#allocation9], 64, 64, 4
        $region28: #{decoder_forward.1} parent=11 // pred_fallthru
          _
        // Predicated region
        $region29: #{decoder_forward.1} parent=11 // pred_check
          %p412 = pneg %p190
        $region30: #{decoder_forward.1} parent=11 // pred_check_branch
          %414 = sbr.rel (%p412) target = $region32
        $region31: #{decoder_forward.1} parent=11 // pred_region
          %416 = vsyncadd [#allocation9], 0
          %s417 = sshll.u32 %s6, 4
          %s418 = int_to_ptr.hbm [resolvable:$true] %s417
          %s419 = sshll.u32 [#allocation10], 4
          %s420 = int_to_ptr.vmem [resolvable:$true] %s419
          %425 = dma.hbm_to_vmem [thread:$0]  %s418, 2048, %s420, [#allocation9], 128, 128, 8
        $region32: #{decoder_forward.1} parent=11 // pred_fallthru
          _
        // Predicated region
        $region33: #{decoder_forward.1} parent=11 // pred_check
          %p426 = pneg %p211
        $region34: #{decoder_forward.1} parent=11 // pred_check_branch
          %428 = sbr.rel (%p426) target = $region36
        $region35: #{decoder_forward.1} parent=11 // pred_region
          %430 = vsyncadd [#allocation12], 0
          %s431 = sshll.u32 %s7, 4
          %s432 = int_to_ptr.hbm [resolvable:$true] %s431
          %s433 = sshll.u32 [#allocation11], 4
          %s434 = int_to_ptr.vmem [resolvable:$true] %s433
          %439 = dma.hbm_to_vmem [thread:$0]  %s432, 1024, %s434, [#allocation12], 64, 64, 4
        $region36: #{decoder_forward.1} parent=11 // pred_fallthru
          _
        // Predicated region
        $region37: #{decoder_forward.1} parent=11 // pred_check
          %p440 = pneg %p232
        $region38: #{decoder_forward.1} parent=11 // pred_check_branch
          %442 = sbr.rel (%p440) target = $region40
        $region39: #{decoder_forward.1} parent=11 // pred_region
          _
        $region40: #{decoder_forward.1} parent=11 // pred_fallthru
          _
        // Predicated region
        $region41: #{decoder_forward.1} parent=11 // pred_check
          %p443 = pneg %p253
        $region42: #{decoder_forward.1} parent=11 // pred_check_branch
          %445 = sbr.rel (%p443) target = $region44
        $region43: #{decoder_forward.1} parent=11 // pred_region
          _
        $region44: #{decoder_forward.1} parent=11 // pred_fallthru
          _
        // Predicated region
        $region45: #{decoder_forward.1} parent=11 // pred_check
          %p446 = pneg %p274
        $region46: #{decoder_forward.1} parent=11 // pred_check_branch
          %448 = sbr.rel (%p446) target = $region48
        $region47: #{decoder_forward.1} parent=11 // pred_region
          %450 = vsyncadd [#allocation12], 0
          %s451 = sshll.u32 %s10, 4
          %s452 = int_to_ptr.hbm [resolvable:$true] %s451
          %s453 = sshll.u32 [#allocation13], 4
          %s454 = int_to_ptr.vmem [resolvable:$true] %s453
          %459 = dma.hbm_to_vmem [thread:$0]  %s452, 4096, %s454, [#allocation12], 256, 256, 16
        $region48: #{decoder_forward.1} parent=11 // pred_fallthru
          _
        // Predicated region
        $region49: #{decoder_forward.1} parent=11 // pred_check
          %p460 = pneg %p295
        $region50: #{decoder_forward.1} parent=11 // pred_check_branch
          %462 = sbr.rel (%p460) target = $region52
        $region51: #{decoder_forward.1} parent=11 // pred_region
          %464 = vsyncadd [#allocation15], 0
          %s466 = sshll.u32 %s11, 4
          %s467 = int_to_ptr.hbm [resolvable:$true] %s466
          %s468 = sshll.u32 [#allocation14], 4
          %s469 = int_to_ptr.vmem [resolvable:$true] %s468
          %471 = dma.hbm_to_vmem [thread:$0]  %s467, 64, %s469, [#allocation15]
        $region52: #{decoder_forward.1} parent=11 // pred_fallthru
          _
        // Predicated region
        $region53: #{decoder_forward.1} parent=11 // pred_check
          %p472 = pneg %p316
        $region54: #{decoder_forward.1} parent=11 // pred_check_branch
          %474 = sbr.rel (%p472) target = $region56
        $region55: #{decoder_forward.1} parent=11 // pred_region
          %476 = vsyncadd [#allocation15], 0
          %s477 = sshll.u32 %s12, 4
          %s478 = int_to_ptr.hbm [resolvable:$true] %s477
          %s479 = sshll.u32 [#allocation16], 4
          %s480 = int_to_ptr.vmem [resolvable:$true] %s479
          %485 = dma.hbm_to_vmem [thread:$0]  %s478, 4096, %s480, [#allocation15], 64, 64, 4
        $region56: #{decoder_forward.1} parent=11 // pred_fallthru
          _
        // Predicated region
        $region57: #{decoder_forward.1} parent=11 // pred_check
          %p486 = pneg %p337
        $region58: #{decoder_forward.1} parent=11 // pred_check_branch
          %488 = sbr.rel (%p486) target = $region60
        $region59: #{decoder_forward.1} parent=11 // pred_region
          %490 = vsyncadd [#allocation18], 0
          %s492 = sshll.u32 %s13, 4
          %s493 = int_to_ptr.hbm [resolvable:$true] %s492
          %s494 = sshll.u32 [#allocation17], 4
          %s495 = int_to_ptr.vmem [resolvable:$true] %s494
          %497 = dma.hbm_to_vmem [thread:$0]  %s493, 16, %s495, [#allocation18]
        $region60: #{decoder_forward.1} parent=11 // pred_fallthru
          _
      $region12: #{decoder_forward.1} parent=5 // pred_fallthru
        _
      %p498 = scmp.lt.s32.totalorder %s33, 2
      // Predicated region
      $region61: #{decoder_forward.1} parent=5 // pred_check
        %p499 = pneg %p498
      $region62: #{decoder_forward.1} parent=5 // pred_check_branch
        %501 = sbr.rel (%p499) target = $region64
      $region63: #{decoder_forward.1} parent=5 // pred_region
        // Predicated region
        $region65: #{decoder_forward.1} parent=63 // pred_check
          %p502 = pneg %p53
        $region66: #{decoder_forward.1} parent=63 // pred_check_branch
          %504 = sbr.rel (%p502) target = $region68
        $region67: #{decoder_forward.1} parent=63 // pred_region
          %s505 = sand.u32 %s43, 1
          %s506 = scalar_lea.sflag [#allocation3], %s505
          %s507 = sand.u32 %s43, 1
          %s508 = smul.addr %s507, 8
          %s509 = scalar_lea.vmem [#allocation2], %s508
          %511 = vsyncadd %s506, 0
          %s512 = smul.addr %s33, 8
          %s513 = scalar_lea.hbm %s0, %s512
          %s515 = sshll.u32 %s513, 4
          %s516 = int_to_ptr.hbm [resolvable:$true] %s515
          %s517 = sshll.u32 %s509, 4
          %s518 = int_to_ptr.vmem [resolvable:$true] %s517
          %520 = dma.hbm_to_vmem [thread:$0]  %s516, 128, %s518, %s506
        $region68: #{decoder_forward.1} parent=63 // pred_fallthru
          _
        // Predicated region
        $region69: #{decoder_forward.1} parent=63 // pred_check
          %p521 = pneg %p79
        $region70: #{decoder_forward.1} parent=63 // pred_check_branch
          %523 = sbr.rel (%p521) target = $region72
        $region71: #{decoder_forward.1} parent=63 // pred_region
          %s524 = sand.u32 %s33, 1
          %s525 = scalar_lea.sflag [#allocation6], %s524
          %s526 = sand.u32 %s69, 1
          %s527 = smul.addr %s526, 16
          %s528 = scalar_lea.vmem [#allocation5], %s527
          %530 = vsyncadd %s525, 0
          %s531 = smul.addr %s33, 2
          %s532 = smul.addr %s531, 8
          %s533 = scalar_lea.hbm %s1, %s532
          %s534 = sshll.u32 %s533, 4
          %s535 = int_to_ptr.hbm [resolvable:$true] %s534
          %s536 = sshll.u32 %s528, 4
          %s537 = int_to_ptr.vmem [resolvable:$true] %s536
          %542 = dma.hbm_to_vmem [thread:$0]  %s535, 256, %s537, %s525, 128, 128, 8
        $region72: #{decoder_forward.1} parent=63 // pred_fallthru
          _
      $region64: #{decoder_forward.1} parent=5 // pred_fallthru
        _
      %p543 = scmp.le.s32.totalorder 1, %s33
      %p544 = scmp.lt.s32.totalorder %s33, 3
      %p545 = pnand %p543, %p544
      %p546 = pneg %p545
      // Predicated region
      $region73: #{decoder_forward.1} parent=5 // pred_check
        _
      $region74: #{decoder_forward.1} parent=5 // pred_check_branch
        %548 = sbr.rel (%p545) target = $region76
      $region75: #{decoder_forward.1} parent=5 // pred_region
        %s549 = ssub.s32 %s33, 1
        %s550 = sand.u32 %s46, 1
        %s551 = scalar_lea.sflag [#allocation3], %s550
        %s552 = sand.u32 %s46, 1
        %s553 = smul.addr %s552, 8
        %s554 = scalar_lea.vmem [#allocation2], %s553
        // Predicated region
        $region77: #{decoder_forward.1} parent=75 // pred_check
          %p555 = pneg %p59
        $region78: #{decoder_forward.1} parent=75 // pred_check_branch
          %557 = sbr.rel (%p555) target = $region80
        $region79: #{decoder_forward.1} parent=75 // pred_region
          %559 = dma.done %s551, 128
        $region80: #{decoder_forward.1} parent=75 // pred_fallthru
          _
        %s560 = sand.u32 %s38, 1
        %s561 = scalar_lea.sflag [#allocation6], %s560
        %s562 = sand.u32 %s72, 1
        %s563 = smul.addr %s562, 16
        %s564 = scalar_lea.vmem [#allocation5], %s563
        // Predicated region
        $region81: #{decoder_forward.1} parent=75 // pred_check
          %p565 = pneg %p85
        $region82: #{decoder_forward.1} parent=75 // pred_check_branch
          %567 = sbr.rel (%p565) target = $region84
        $region83: #{decoder_forward.1} parent=75 // pred_region
          %569 = dma.done %s561, 256
        $region84: #{decoder_forward.1} parent=75 // pred_fallthru
          _
        // Predicated region
        $region85: #{decoder_forward.1} parent=75 // pred_check
          %p570 = pneg %p106
        $region86: #{decoder_forward.1} parent=75 // pred_check_branch
          %572 = sbr.rel (%p570) target = $region88
        $region87: #{decoder_forward.1} parent=75 // pred_region
          %574 = dma.done [#allocation6], 4096
        $region88: #{decoder_forward.1} parent=75 // pred_fallthru
          _
        // Predicated region
        $region89: #{decoder_forward.1} parent=75 // pred_check
          %p575 = pneg %p169
        $region90: #{decoder_forward.1} parent=75 // pred_check_branch
          %577 = sbr.rel (%p575) target = $region92
        $region91: #{decoder_forward.1} parent=75 // pred_region
          %579 = dma.done [#allocation9], 1024
        $region92: #{decoder_forward.1} parent=75 // pred_fallthru
          _
        // Predicated region
        $region93: #{decoder_forward.1} parent=75 // pred_check
          %p580 = pneg %p190
        $region94: #{decoder_forward.1} parent=75 // pred_check_branch
          %582 = sbr.rel (%p580) target = $region96
        $region95: #{decoder_forward.1} parent=75 // pred_region
          %584 = dma.done [#allocation9], 2048
        $region96: #{decoder_forward.1} parent=75 // pred_fallthru
          _
        // Predicated region
        $region97: #{decoder_forward.1} parent=75 // pred_check
          %p585 = pneg %p211
        $region98: #{decoder_forward.1} parent=75 // pred_check_branch
          %587 = sbr.rel (%p585) target = $region100
        $region99: #{decoder_forward.1} parent=75 // pred_region
          %589 = dma.done [#allocation12], 1024
        $region100: #{decoder_forward.1} parent=75 // pred_fallthru
          _
        // Predicated region
        $region101: #{decoder_forward.1} parent=75 // pred_check
          %p590 = pneg %p274
        $region102: #{decoder_forward.1} parent=75 // pred_check_branch
          %592 = sbr.rel (%p590) target = $region104
        $region103: #{decoder_forward.1} parent=75 // pred_region
          %594 = dma.done [#allocation12], 4096
        $region104: #{decoder_forward.1} parent=75 // pred_fallthru
          _
        // Predicated region
        $region105: #{decoder_forward.1} parent=75 // pred_check
          %p595 = pneg %p295
        $region106: #{decoder_forward.1} parent=75 // pred_check_branch
          %597 = sbr.rel (%p595) target = $region108
        $region107: #{decoder_forward.1} parent=75 // pred_region
          %599 = dma.done [#allocation15], 64
        $region108: #{decoder_forward.1} parent=75 // pred_fallthru
          _
        // Predicated region
        $region109: #{decoder_forward.1} parent=75 // pred_check
          %p600 = pneg %p316
        $region110: #{decoder_forward.1} parent=75 // pred_check_branch
          %602 = sbr.rel (%p600) target = $region112
        $region111: #{decoder_forward.1} parent=75 // pred_region
          %604 = dma.done [#allocation15], 4096
        $region112: #{decoder_forward.1} parent=75 // pred_fallthru
          _
        // Predicated region
        $region113: #{decoder_forward.1} parent=75 // pred_check
          %p605 = pneg %p337
        $region114: #{decoder_forward.1} parent=75 // pred_check_branch
          %607 = sbr.rel (%p605) target = $region116
        $region115: #{decoder_forward.1} parent=75 // pred_region
          %609 = dma.done [#allocation18], 16
        $region116: #{decoder_forward.1} parent=75 // pred_fallthru
          _
        %s610 = sand.u32 %s46, 1
        %s611 = scalar_lea.sflag [#allocation3], %s610
        %s612 = sand.u32 %s46, 1
        %s613 = smul.addr %s612, 8
        %s614 = scalar_lea.vmem [#allocation2], %s613
        %p615 = pneg %p59
        %p616 = pneg %p56
        %s617 = sand.u32 %s38, 1
        %s618 = scalar_lea.sflag [#allocation6], %s617
        %s619 = sand.u32 %s72, 1
        %s620 = smul.addr %s619, 16
        %s621 = scalar_lea.vmem [#allocation5], %s620
        %p622 = pneg %p85
        %p623 = pneg %p82
        %p624 = pneg %p106
        %p625 = pneg %p103
        %p626 = pneg %p127
        %p627 = pneg %p124
        %p628 = pneg %p148
        %p629 = pneg %p145
        %p630 = pneg %p169
        %p631 = pneg %p166
        %p632 = pneg %p190
        %p633 = pneg %p187
        %p634 = pneg %p211
        %p635 = pneg %p208
        %p636 = pneg %p232
        %p637 = pneg %p229
        %p638 = pneg %p253
        %p639 = pneg %p250
        %p640 = pneg %p274
        %p641 = pneg %p271
        %p642 = pneg %p295
        %p643 = pneg %p292
        %p644 = pneg %p316
        %p645 = pneg %p313
        %p646 = pneg %p337
        %p647 = pneg %p334
        %p648 = pneg %p363
        %p649 = pneg %p360
        %s650 = sand.u32 %s350, 1
        %s651 = scalar_lea.sflag [#allocation4], %s650
        %s652 = sand.u32 %s350, 1
        %s653 = smul.addr %s652, 8
        %s654 = scalar_lea.vmem [#allocation19], %s653
        %v655 = vld [vmem:[%s554] sm:$0xff]
        %v656 = vld [vmem:[%s564] sm:$0xff]
        %v657 = vld [vmem:[%s564 + $0x8] sm:$0xff]
        %v658 = vld [vmem:[%s3] sm:$0x1]
        %v659 = vld [vmem:[%s4] sm:$0x1]
        %660 = vadd.xlane.f32.xlu0 %v655
        %v661 = vpop.xlane.xlu0 %660
        %662 = vadd.xlane.f32.xlu0 %v656
        %v663 = vpop.xlane.xlu0 %662
        %664 = vadd.xlane.f32.xlu0 %v657
        %v665 = vpop.xlane.xlu0 %664
        %v666 = vrcp.pop 128.0
        %v667 = vmul.f32 128.0, %v666
        %v668 = vsub.f32 1.0, %v667
        %v669 = vmul.f32 %v666, %v668
        %v670 = vadd.f32 %v666, %v669
        %vm671 = vweird.f32 %v666
        %v672 = vsel %vm671, %v666, %v670
        %v673 = vmul.f32 %v661, %v672
        %v674 = vmul.f32 %v663, %v672
        %v675 = vmul.f32 %v665, %v672
        %v676 = vsub.f32 %v655, %v673
        %v677 = vsub.f32 %v656, %v674
        %v678 = vsub.f32 %v657, %v675
        %v679 = vmul.f32 %v676, %v676
        %v680 = vmul.f32 %v677, %v677
        %v681 = vmul.f32 %v678, %v678
        %682 = vadd.xlane.f32.xlu0 %v679
        %v683 = vpop.xlane.xlu0 %682
        %684 = vadd.xlane.f32.xlu0 %v680
        %v685 = vpop.xlane.xlu0 %684
        %686 = vadd.xlane.f32.xlu0 %v681
        %v687 = vpop.xlane.xlu0 %686
        %v688 = vmul.f32 %v683, %v672
        %v689 = vmul.f32 %v685, %v672
        %v690 = vmul.f32 %v687, %v672
        %v691 = vadd.f32 %v688, 1e-05
        %v692 = vadd.f32 %v689, 1e-05
        %v693 = vadd.f32 %v690, 1e-05
        %v694 = vrsqrt.pop %v691
        %v695 = vmul.f32 %v694, %v691
        %v696 = vmul.f32 %v695, %v694
        %v697 = vmul.f32 0.5, %v696
        %v698 = vsub.f32 1.5, %v697
        %v699 = vmul.f32 %v694, %v698
        %vm700 = vweird.f32 %v691
        %vm701 = vweird.f32 %v694
        %vm702 = vmor %vm700, %vm701
        %v703 = vsel %vm702, %v694, %v699
        %v704 = vrsqrt.pop %v692
        %v705 = vmul.f32 %v704, %v692
        %v706 = vmul.f32 %v705, %v704
        %v707 = vmul.f32 0.5, %v706
        %v708 = vsub.f32 1.5, %v707
        %v709 = vmul.f32 %v704, %v708
        %vm710 = vweird.f32 %v692
        %vm711 = vweird.f32 %v704
        %vm712 = vmor %vm710, %vm711
        %v713 = vsel %vm712, %v704, %v709
        %v714 = vrsqrt.pop %v693
        %v715 = vmul.f32 %v714, %v693
        %v716 = vmul.f32 %v715, %v714
        %v717 = vmul.f32 0.5, %v716
        %v718 = vsub.f32 1.5, %v717
        %v719 = vmul.f32 %v714, %v718
        %vm720 = vweird.f32 %v693
        %vm721 = vweird.f32 %v714
        %vm722 = vmor %vm720, %vm721
        %v723 = vsel %vm722, %v714, %v719
        %v724 = vmul.f32 %v676, %v703
        %v725 = vmul.f32 %v677, %v713
        %v726 = vmul.f32 %v678, %v723
        %v728 = vperm.slane %v658, 0
        %v730 = vmul.f32 %v724, %v728
        %v731 = vmul.f32 %v725, %v728
        %v732 = vmul.f32 %v726, %v728
        %v734 = vperm.slane %v659, 0
        %v736 = vadd.f32 %v730, %v734
        %v737 = vadd.f32 %v731, %v734
        %v738 = vadd.f32 %v732, %v734
        %v739 = vpack.c.bf16 %v736, %v736
        %v740 = vld [vmem:[#allocation8] sm:$0xf]
        %v741 = vld [vmem:[#allocation8 + $0x4] sm:$0xf]
        %v742 = vld [vmem:[#allocation8 + $0x8] sm:$0xf]
        %v743 = vld [vmem:[#allocation8 + $0xc] sm:$0xf]
        %v744 = vld [vmem:[#allocation8 + $0x10] sm:$0xf]
        %v745 = vld [vmem:[#allocation8 + $0x14] sm:$0xf]
        %v746 = vld [vmem:[#allocation8 + $0x18] sm:$0xf]
        %v747 = vld [vmem:[#allocation8 + $0x1c] sm:$0xf]
        %v748 = vld [vmem:[#allocation8 + $0x20] sm:$0xf]
        %v749 = vld [vmem:[#allocation8 + $0x24] sm:$0xf]
        %v750 = vld [vmem:[#allocation8 + $0x28] sm:$0xf]
        %v751 = vld [vmem:[#allocation8 + $0x2c] sm:$0xf]
        %v752 = vld [vmem:[#allocation8 + $0x30] sm:$0xf]
        %v753 = vld [vmem:[#allocation8 + $0x34] sm:$0xf]
        %v754 = vld [vmem:[#allocation8 + $0x38] sm:$0xf]
        %v755 = vld [vmem:[#allocation8 + $0x3c] sm:$0xf]
        %v772 = vunpack.c.l.b16 %v740
        %v773 = vunpack.c.l.b16 %v741
        %v774 = vunpack.c.l.b16 %v742
        %v775 = vunpack.c.l.b16 %v743
        %v776 = vunpack.c.l.b16 %v744
        %v777 = vunpack.c.l.b16 %v745
        %v778 = vunpack.c.l.b16 %v746
        %v779 = vunpack.c.l.b16 %v747
        %v780 = vunpack.c.l.b16 %v748
        %v781 = vunpack.c.l.b16 %v749
        %v782 = vunpack.c.l.b16 %v750
        %v783 = vunpack.c.l.b16 %v751
        %v784 = vunpack.c.l.b16 %v752
        %v785 = vunpack.c.l.b16 %v753
        %v786 = vunpack.c.l.b16 %v754
        %v787 = vunpack.c.l.b16 %v755
        %v788 = vpack.c.b16 %v773, %v772
        %v789 = vpack.c.b16 %v775, %v774
        %v790 = vpack.c.b16 %v777, %v776
        %v791 = vpack.c.b16 %v779, %v778
        %v792 = vpack.c.b16 %v781, %v780
        %v793 = vpack.c.b16 %v783, %v782
        %v794 = vpack.c.b16 %v785, %v784
        %v795 = vpack.c.b16 %v787, %v786
        %804 = vmatpush.bf16.msra.mxu0 %v795
        %805 = vmatpush.bf16.msra.mxu0 %v794
        %806 = vmatpush.bf16.msra.mxu0 %v793
        %807 = vmatpush.bf16.msra.mxu0 %v792
        %808 = vmatpush.bf16.msra.mxu0 %v791
        %809 = vmatpush.bf16.msra.mxu0 %v790
        %810 = vmatpush.bf16.msra.mxu0 %v789
        %811 = vmatpush.bf16.msra.mxu0 %v788
        %812 = vmatmul.bf16.gmra.mxu0 %v739
        %v813 = vpop.f32.mrf.mxu0
        %v814 = vadd.f32 0.0, %v813
        %v815 = vpop.f32.mrf.mxu0
        %816 = vdwg.mxu0
        %v817 = vpack.c.bf16 %v738, %v737
        %v818 = vld [vmem:[#allocation10] sm:$0xff]
        %v819 = vld [vmem:[#allocation10 + $0x8] sm:$0xff]
        %v820 = vld [vmem:[#allocation10 + $0x10] sm:$0xff]
        %v821 = vld [vmem:[#allocation10 + $0x18] sm:$0xff]
        %v822 = vld [vmem:[#allocation10 + $0x20] sm:$0xff]
        %v823 = vld [vmem:[#allocation10 + $0x28] sm:$0xff]
        %v824 = vld [vmem:[#allocation10 + $0x30] sm:$0xff]
        %v825 = vld [vmem:[#allocation10 + $0x38] sm:$0xff]
        %v826 = vld [vmem:[#allocation10 + $0x40] sm:$0xff]
        %v827 = vld [vmem:[#allocation10 + $0x48] sm:$0xff]
        %v828 = vld [vmem:[#allocation10 + $0x50] sm:$0xff]
        %v829 = vld [vmem:[#allocation10 + $0x58] sm:$0xff]
        %v830 = vld [vmem:[#allocation10 + $0x60] sm:$0xff]
        %v831 = vld [vmem:[#allocation10 + $0x68] sm:$0xff]
        %v832 = vld [vmem:[#allocation10 + $0x70] sm:$0xff]
        %v833 = vld [vmem:[#allocation10 + $0x78] sm:$0xff]
        %v850 = vunpack.c.l.b16 %v818
        %v851 = vunpack.c.h.b16 %v818
        %v852 = vunpack.c.l.b16 %v819
        %v853 = vunpack.c.h.b16 %v819
        %v854 = vunpack.c.l.b16 %v820
        %v855 = vunpack.c.h.b16 %v820
        %v856 = vunpack.c.l.b16 %v821
        %v857 = vunpack.c.h.b16 %v821
        %v858 = vunpack.c.l.b16 %v822
        %v859 = vunpack.c.h.b16 %v822
        %v860 = vunpack.c.l.b16 %v823
        %v861 = vunpack.c.h.b16 %v823
        %v862 = vunpack.c.l.b16 %v824
        %v863 = vunpack.c.h.b16 %v824
        %v864 = vunpack.c.l.b16 %v825
        %v865 = vunpack.c.h.b16 %v825
        %v866 = vunpack.c.l.b16 %v826
        %v867 = vunpack.c.h.b16 %v826
        %v868 = vunpack.c.l.b16 %v827
        %v869 = vunpack.c.h.b16 %v827
        %v870 = vunpack.c.l.b16 %v828
        %v871 = vunpack.c.h.b16 %v828
        %v872 = vunpack.c.l.b16 %v829
        %v873 = vunpack.c.h.b16 %v829
        %v874 = vunpack.c.l.b16 %v830
        %v875 = vunpack.c.h.b16 %v830
        %v876 = vunpack.c.l.b16 %v831
        %v877 = vunpack.c.h.b16 %v831
        %v878 = vunpack.c.l.b16 %v832
        %v879 = vunpack.c.h.b16 %v832
        %v880 = vunpack.c.l.b16 %v833
        %v881 = vunpack.c.h.b16 %v833
        %v882 = vpack.c.b16 %v852, %v850
        %v883 = vpack.c.b16 %v853, %v851
        %v884 = vpack.c.b16 %v856, %v854
        %v885 = vpack.c.b16 %v857, %v855
        %v886 = vpack.c.b16 %v860, %v858
        %v887 = vpack.c.b16 %v861, %v859
        %v888 = vpack.c.b16 %v864, %v862
        %v889 = vpack.c.b16 %v865, %v863
        %v890 = vpack.c.b16 %v868, %v866
        %v891 = vpack.c.b16 %v869, %v867
        %v892 = vpack.c.b16 %v872, %v870
        %v893 = vpack.c.b16 %v873, %v871
        %v894 = vpack.c.b16 %v876, %v874
        %v895 = vpack.c.b16 %v877, %v875
        %v896 = vpack.c.b16 %v880, %v878
        %v897 = vpack.c.b16 %v881, %v879
        %914 = vmatpush.bf16.msra.mxu0 %v896
        %915 = vmatpush.bf16.msra.mxu0 %v894
        %916 = vmatpush.bf16.msra.mxu0 %v892
        %917 = vmatpush.bf16.msra.mxu0 %v890
        %918 = vmatpush.bf16.msra.mxu0 %v888
        %919 = vmatpush.bf16.msra.mxu0 %v886
        %920 = vmatpush.bf16.msra.mxu0 %v884
        %921 = vmatpush.bf16.msra.mxu0 %v882
        %922 = vmatmul.bf16.gmra.mxu0 %v817
        %v923 = vpop.f32.mrf.mxu0
        %v924 = vadd.f32 0.0, %v923
        %v925 = vpop.f32.mrf.mxu0
        %v926 = vadd.f32 0.0, %v925
        %927 = vdwg.mxu0
        %928 = vmatpush.bf16.msra.mxu0 %v897
        %929 = vmatpush.bf16.msra.mxu0 %v895
        %930 = vmatpush.bf16.msra.mxu0 %v893
        %931 = vmatpush.bf16.msra.mxu0 %v891
        %932 = vmatpush.bf16.msra.mxu0 %v889
        %933 = vmatpush.bf16.msra.mxu0 %v887
        %934 = vmatpush.bf16.msra.mxu0 %v885
        %935 = vmatpush.bf16.msra.mxu0 %v883
        %936 = vmatmul.bf16.gmra.mxu0 %v817
        %v937 = vpop.f32.mrf.mxu0
        %v938 = vadd.f32 0.0, %v937
        %v939 = vpop.f32.mrf.mxu0
        %v940 = vadd.f32 0.0, %v939
        %941 = vdwg.mxu0
        %v942 = vld [vmem:[#allocation7] sm:$0xff]
        %v943 = vld [vmem:[#allocation7 + $0x8] sm:$0xff]
        %v944 = vld [vmem:[#allocation7 + $0x10] sm:$0xff]
        %v945 = vld [vmem:[#allocation7 + $0x18] sm:$0xff]
        %v946 = vld [vmem:[#allocation7 + $0x20] sm:$0xff]
        %v947 = vld [vmem:[#allocation7 + $0x28] sm:$0xff]
        %v948 = vld [vmem:[#allocation7 + $0x30] sm:$0xff]
        %v949 = vld [vmem:[#allocation7 + $0x38] sm:$0xff]
        %v950 = vld [vmem:[#allocation7 + $0x40] sm:$0xff]
        %v951 = vld [vmem:[#allocation7 + $0x48] sm:$0xff]
        %v952 = vld [vmem:[#allocation7 + $0x50] sm:$0xff]
        %v953 = vld [vmem:[#allocation7 + $0x58] sm:$0xff]
        %v954 = vld [vmem:[#allocation7 + $0x60] sm:$0xff]
        %v955 = vld [vmem:[#allocation7 + $0x68] sm:$0xff]
        %v956 = vld [vmem:[#allocation7 + $0x70] sm:$0xff]
        %v957 = vld [vmem:[#allocation7 + $0x78] sm:$0xff]
        %v958 = vld [vmem:[#allocation7 + $0x80] sm:$0xff]
        %v959 = vld [vmem:[#allocation7 + $0x88] sm:$0xff]
        %v960 = vld [vmem:[#allocation7 + $0x90] sm:$0xff]
        %v961 = vld [vmem:[#allocation7 + $0x98] sm:$0xff]
        %v962 = vld [vmem:[#allocation7 + $0xa0] sm:$0xff]
        %v963 = vld [vmem:[#allocation7 + $0xa8] sm:$0xff]
        %v964 = vld [vmem:[#allocation7 + $0xb0] sm:$0xff]
        %v965 = vld [vmem:[#allocation7 + $0xb8] sm:$0xff]
        %v966 = vld [vmem:[#allocation7 + $0xc0] sm:$0xff]
        %v967 = vld [vmem:[#allocation7 + $0xc8] sm:$0xff]
        %v968 = vld [vmem:[#allocation7 + $0xd0] sm:$0xff]
        %v969 = vld [vmem:[#allocation7 + $0xd8] sm:$0xff]
        %v970 = vld [vmem:[#allocation7 + $0xe0] sm:$0xff]
        %v971 = vld [vmem:[#allocation7 + $0xe8] sm:$0xff]
        %v972 = vld [vmem:[#allocation7 + $0xf0] sm:$0xff]
        %v973 = vld [vmem:[#allocation7 + $0xf8] sm:$0xff]
        %v974 = vmul.f32 %v924, %v942
        %v975 = vmul.f32 %v938, %v943
        %v976 = vmul.f32 %v926, %v944
        %v977 = vmul.f32 %v940, %v945
        %v978 = vmul.f32 %v924, %v946
        %v979 = vmul.f32 %v938, %v947
        %v980 = vmul.f32 %v926, %v948
        %v981 = vmul.f32 %v940, %v949
        %v982 = vmul.f32 %v924, %v950
        %v983 = vmul.f32 %v938, %v951
        %v984 = vmul.f32 %v926, %v952
        %v985 = vmul.f32 %v940, %v953
        %v986 = vmul.f32 %v924, %v954
        %v987 = vmul.f32 %v938, %v955
        %v988 = vmul.f32 %v926, %v956
        %v989 = vmul.f32 %v940, %v957
        %v990 = vmul.f32 %v924, %v958
        %v991 = vmul.f32 %v938, %v959
        %v992 = vmul.f32 %v926, %v960
        %v993 = vmul.f32 %v940, %v961
        %v994 = vmul.f32 %v924, %v962
        %v995 = vmul.f32 %v938, %v963
        %v996 = vmul.f32 %v926, %v964
        %v997 = vmul.f32 %v940, %v965
        %v998 = vmul.f32 %v924, %v966
        %v999 = vmul.f32 %v938, %v967
        %v1000 = vmul.f32 %v926, %v968
        %v1001 = vmul.f32 %v940, %v969
        %v1002 = vmul.f32 %v924, %v970
        %v1003 = vmul.f32 %v938, %v971
        %v1004 = vmul.f32 %v926, %v972
        %v1005 = vmul.f32 %v940, %v973
        %v1006 = vpack.c.bf16 %v975, %v974
        %v1007 = vpack.c.bf16 %v977, %v976
        %v1008 = vpack.c.bf16 %v979, %v978
        %v1009 = vpack.c.bf16 %v981, %v980
        %v1010 = vpack.c.bf16 %v983, %v982
        %v1011 = vpack.c.bf16 %v985, %v984
        %v1012 = vpack.c.bf16 %v987, %v986
        %v1013 = vpack.c.bf16 %v989, %v988
        %v1014 = vpack.c.bf16 %v991, %v990
        %v1015 = vpack.c.bf16 %v993, %v992
        %v1016 = vpack.c.bf16 %v995, %v994
        %v1017 = vpack.c.bf16 %v997, %v996
        %v1018 = vpack.c.bf16 %v999, %v998
        %v1019 = vpack.c.bf16 %v1001, %v1000
        %v1020 = vpack.c.bf16 %v1003, %v1002
        %v1021 = vpack.c.bf16 %v1005, %v1004
        %v1022 = vpack.c.bf16 %v814, %v814
        %v1039 = vunpack.c.l.b16 %v1006
        %v1040 = vunpack.c.l.b16 %v1007
        %v1041 = vunpack.c.l.b16 %v1008
        %v1042 = vunpack.c.l.b16 %v1009
        %v1043 = vunpack.c.l.b16 %v1010
        %v1044 = vunpack.c.l.b16 %v1011
        %v1045 = vunpack.c.l.b16 %v1012
        %v1046 = vunpack.c.l.b16 %v1013
        %v1047 = vunpack.c.l.b16 %v1014
        %v1048 = vunpack.c.l.b16 %v1015
        %v1049 = vunpack.c.l.b16 %v1016
        %v1050 = vunpack.c.l.b16 %v1017
        %v1051 = vunpack.c.l.b16 %v1018
        %v1052 = vunpack.c.l.b16 %v1019
        %v1053 = vunpack.c.l.b16 %v1020
        %v1054 = vunpack.c.l.b16 %v1021
        %v1055 = vpack.c.b16 %v1040, %v1039
        %v1056 = vpack.c.b16 %v1042, %v1041
        %v1057 = vpack.c.b16 %v1044, %v1043
        %v1058 = vpack.c.b16 %v1046, %v1045
        %v1059 = vpack.c.b16 %v1048, %v1047
        %v1060 = vpack.c.b16 %v1050, %v1049
        %v1061 = vpack.c.b16 %v1052, %v1051
        %v1062 = vpack.c.b16 %v1054, %v1053
        %1071 = vmatpush.bf16.xpose.msra.mxu0 %v1062
        %1072 = vmatpush.bf16.xpose.msra.mxu0 %v1061
        %1073 = vmatpush.bf16.xpose.msra.mxu0 %v1060
        %1074 = vmatpush.bf16.xpose.msra.mxu0 %v1059
        %1075 = vmatpush.bf16.xpose.msra.mxu0 %v1058
        %1076 = vmatpush.bf16.xpose.msra.mxu0 %v1057
        %1077 = vmatpush.bf16.xpose.msra.mxu0 %v1056
        %1078 = vmatpush.bf16.xpose.msra.mxu0 %v1055
        %1079 = vmatmul.bf16.gmra.mxu0 %v1022
        %v1080 = vpop.f32.mrf.mxu0
        %v1081 = vadd.f32 0.0, %v1080
        %v1082 = vpop.f32.mrf.mxu0
        %1083 = vdwg.mxu0
        %1084 = vmax.xlane.f32.xlu0 %v1081
        %v1085 = vpop.xlane.xlu0 %1084
        %v1086 = vsub.f32 %v1081, %v1085
        %v1087 = vmul.f32 %v1086, 1.442695
        %v1088 = vpow.pop %v1087
        %v1089 = vpack.c.bf16 %v1088, %v1088
        %v1090 = vrot.slane %v1006, 4
        %v1091 = vrot.slane %v1007, 4
        %v1092 = vrot.slane %v1008, 4
        %v1093 = vrot.slane %v1009, 4
        %v1094 = vrot.slane %v1010, 4
        %v1095 = vrot.slane %v1011, 4
        %v1096 = vrot.slane %v1012, 4
        %v1097 = vrot.slane %v1013, 4
        %v1098 = vrot.slane %v1014, 4
        %v1099 = vrot.slane %v1015, 4
        %v1100 = vrot.slane %v1016, 4
        %v1101 = vrot.slane %v1017, 4
        %v1102 = vrot.slane %v1018, 4
        %v1103 = vrot.slane %v1019, 4
        %v1104 = vrot.slane %v1020, 4
        %v1105 = vrot.slane %v1021, 4
        %v1106 = vunpack.c.l.b16 %v1090
        %v1107 = vunpack.c.l.b16 %v1091
        %v1108 = vunpack.c.l.b16 %v1092
        %v1109 = vunpack.c.l.b16 %v1093
        %v1110 = vunpack.c.l.b16 %v1094
        %v1111 = vunpack.c.l.b16 %v1095
        %v1112 = vunpack.c.l.b16 %v1096
        %v1113 = vunpack.c.l.b16 %v1097
        %v1114 = vunpack.c.l.b16 %v1098
        %v1115 = vunpack.c.l.b16 %v1099
        %v1116 = vunpack.c.l.b16 %v1100
        %v1117 = vunpack.c.l.b16 %v1101
        %v1118 = vunpack.c.l.b16 %v1102
        %v1119 = vunpack.c.l.b16 %v1103
        %v1120 = vunpack.c.l.b16 %v1104
        %v1121 = vunpack.c.l.b16 %v1105
        %v1122 = vpack.c.b16 %v1107, %v1106
        %v1123 = vpack.c.b16 %v1109, %v1108
        %v1124 = vpack.c.b16 %v1111, %v1110
        %v1125 = vpack.c.b16 %v1113, %v1112
        %v1126 = vpack.c.b16 %v1115, %v1114
        %v1127 = vpack.c.b16 %v1117, %v1116
        %v1128 = vpack.c.b16 %v1119, %v1118
        %v1129 = vpack.c.b16 %v1121, %v1120
        %1138 = vmatpush.bf16.msra.mxu0 %v1129
        %1139 = vmatpush.bf16.msra.mxu0 %v1128
        %1140 = vmatpush.bf16.msra.mxu0 %v1127
        %1141 = vmatpush.bf16.msra.mxu0 %v1126
        %1142 = vmatpush.bf16.msra.mxu0 %v1125
        %1143 = vmatpush.bf16.msra.mxu0 %v1124
        %1144 = vmatpush.bf16.msra.mxu0 %v1123
        %1145 = vmatpush.bf16.msra.mxu0 %v1122
        %1146 = vmatmul.bf16.gmra.mxu0 %v1089
        %v1147 = vpop.f32.mrf.mxu0
        %v1148 = vadd.f32 0.0, %v1147
        %v1149 = vpop.f32.mrf.mxu0
        %1150 = vdwg.mxu0
        %v1151 = vpack.c.bf16 %v944, %v942
        %v1152 = vpack.c.bf16 %v948, %v946
        %v1153 = vpack.c.bf16 %v952, %v950
        %v1154 = vpack.c.bf16 %v956, %v954
        %v1155 = vpack.c.bf16 %v960, %v958
        %v1156 = vpack.c.bf16 %v964, %v962
        %v1157 = vpack.c.bf16 %v968, %v966
        %v1158 = vpack.c.bf16 %v972, %v970
        %1159 = vmatpush.bf16.msra.mxu0 %v1158
        %1160 = vmatpush.bf16.msra.mxu0 %v1157
        %1161 = vmatpush.bf16.msra.mxu0 %v1156
        %1162 = vmatpush.bf16.msra.mxu0 %v1155
        %1163 = vmatpush.bf16.msra.mxu0 %v1154
        %1164 = vmatpush.bf16.msra.mxu0 %v1153
        %1165 = vmatpush.bf16.msra.mxu0 %v1152
        %1166 = vmatpush.bf16.msra.mxu0 %v1151
        %1167 = vmatmul.bf16.gmra.mxu0 %v1089
        %v1168 = vpop.f32.mrf.mxu0
        %v1169 = vadd.f32 0.0, %v1168
        %v1170 = vpop.f32.mrf.mxu0
        %1171 = vdwg.mxu0
        %v1172 = vmax.f32 %v1169, 1e-30
        %v1173 = vrcp.pop %v1172
        %v1174 = vmul.f32 %v1148, %v1173
        %v1175 = vpack.c.bf16 %v1174, %v1174
        %v1176 = vld [vmem:[#allocation11] sm:$0xf]
        %v1177 = vld [vmem:[#allocation11 + $0x4] sm:$0xf]
        %v1178 = vld [vmem:[#allocation11 + $0x8] sm:$0xf]
        %v1179 = vld [vmem:[#allocation11 + $0xc] sm:$0xf]
        %v1180 = vld [vmem:[#allocation11 + $0x10] sm:$0xf]
        %v1181 = vld [vmem:[#allocation11 + $0x14] sm:$0xf]
        %v1182 = vld [vmem:[#allocation11 + $0x18] sm:$0xf]
        %v1183 = vld [vmem:[#allocation11 + $0x1c] sm:$0xf]
        %v1184 = vld [vmem:[#allocation11 + $0x20] sm:$0xf]
        %v1185 = vld [vmem:[#allocation11 + $0x24] sm:$0xf]
        %v1186 = vld [vmem:[#allocation11 + $0x28] sm:$0xf]
        %v1187 = vld [vmem:[#allocation11 + $0x2c] sm:$0xf]
        %v1188 = vld [vmem:[#allocation11 + $0x30] sm:$0xf]
        %v1189 = vld [vmem:[#allocation11 + $0x34] sm:$0xf]
        %v1190 = vld [vmem:[#allocation11 + $0x38] sm:$0xf]
        %v1191 = vld [vmem:[#allocation11 + $0x3c] sm:$0xf]
        %v1208 = vunpack.c.l.b16 %v1176
        %v1209 = vunpack.c.l.b16 %v1177
        %v1210 = vunpack.c.l.b16 %v1178
        %v1211 = vunpack.c.l.b16 %v1179
        %v1212 = vunpack.c.l.b16 %v1180
        %v1213 = vunpack.c.l.b16 %v1181
        %v1214 = vunpack.c.l.b16 %v1182
        %v1215 = vunpack.c.l.b16 %v1183
        %v1216 = vunpack.c.l.b16 %v1184
        %v1217 = vunpack.c.l.b16 %v1185
        %v1218 = vunpack.c.l.b16 %v1186
        %v1219 = vunpack.c.l.b16 %v1187
        %v1220 = vunpack.c.l.b16 %v1188
        %v1221 = vunpack.c.l.b16 %v1189
        %v1222 = vunpack.c.l.b16 %v1190
        %v1223 = vunpack.c.l.b16 %v1191
        %v1224 = vpack.c.b16 %v1209, %v1208
        %v1225 = vpack.c.b16 %v1211, %v1210
        %v1226 = vpack.c.b16 %v1213, %v1212
        %v1227 = vpack.c.b16 %v1215, %v1214
        %v1228 = vpack.c.b16 %v1217, %v1216
        %v1229 = vpack.c.b16 %v1219, %v1218
        %v1230 = vpack.c.b16 %v1221, %v1220
        %v1231 = vpack.c.b16 %v1223, %v1222
        %1240 = vmatpush.bf16.msra.mxu0 %v1231
        %1241 = vmatpush.bf16.msra.mxu0 %v1230
        %1242 = vmatpush.bf16.msra.mxu0 %v1229
        %1243 = vmatpush.bf16.msra.mxu0 %v1228
        %1244 = vmatpush.bf16.msra.mxu0 %v1227
        %1245 = vmatpush.bf16.msra.mxu0 %v1226
        %1246 = vmatpush.bf16.msra.mxu0 %v1225
        %1247 = vmatpush.bf16.msra.mxu0 %v1224
        %1248 = vmatmul.bf16.gmra.mxu0 %v1175
        %v1249 = vpop.f32.mrf.mxu0
        %v1250 = vadd.f32 %v655, %v1249
        %v1251 = vpop.f32.mrf.mxu0
        %1252 = vdwg.mxu0
        %v1253 = vld [vmem:[%s8] sm:$0x1]
        %v1254 = vld [vmem:[%s9] sm:$0x1]
        %1255 = vadd.xlane.f32.xlu0 %v1250
        %v1256 = vpop.xlane.xlu0 %1255
        %v1257 = vmul.f32 %v1256, %v672
        %v1258 = vsub.f32 %v1250, %v1257
        %v1259 = vmul.f32 %v1258, %v1258
        %1260 = vadd.xlane.f32.xlu0 %v1259
        %v1261 = vpop.xlane.xlu0 %1260
        %v1262 = vmul.f32 %v1261, %v672
        %v1263 = vadd.f32 %v1262, 1e-05
        %v1264 = vrsqrt.pop %v1263
        %v1265 = vmul.f32 %v1264, %v1263
        %v1266 = vmul.f32 %v1265, %v1264
        %v1267 = vmul.f32 0.5, %v1266
        %v1268 = vsub.f32 1.5, %v1267
        %v1269 = vmul.f32 %v1264, %v1268
        %vm1270 = vweird.f32 %v1263
        %vm1271 = vweird.f32 %v1264
        %vm1272 = vmor %vm1270, %vm1271
        %v1273 = vsel %vm1272, %v1264, %v1269
        %v1274 = vmul.f32 %v1258, %v1273
        %v1276 = vperm.slane %v1253, 0
        %v1278 = vmul.f32 %v1274, %v1276
        %v1280 = vperm.slane %v1254, 0
        %v1282 = vadd.f32 %v1278, %v1280
        %v1283 = vpack.c.bf16 %v1282, %v1282
        %v1284 = vld [vmem:[#allocation13] sm:$0xff]
        %v1285 = vld [vmem:[#allocation13 + $0x8] sm:$0xff]
        %v1286 = vld [vmem:[#allocation13 + $0x10] sm:$0xff]
        %v1287 = vld [vmem:[#allocation13 + $0x18] sm:$0xff]
        %v1288 = vld [vmem:[#allocation13 + $0x20] sm:$0xff]
        %v1289 = vld [vmem:[#allocation13 + $0x28] sm:$0xff]
        %v1290 = vld [vmem:[#allocation13 + $0x30] sm:$0xff]
        %v1291 = vld [vmem:[#allocation13 + $0x38] sm:$0xff]
        %v1292 = vld [vmem:[#allocation13 + $0x40] sm:$0xff]
        %v1293 = vld [vmem:[#allocation13 + $0x48] sm:$0xff]
        %v1294 = vld [vmem:[#allocation13 + $0x50] sm:$0xff]
        %v1295 = vld [vmem:[#allocation13 + $0x58] sm:$0xff]
        %v1296 = vld [vmem:[#allocation13 + $0x60] sm:$0xff]
        %v1297 = vld [vmem:[#allocation13 + $0x68] sm:$0xff]
        %v1298 = vld [vmem:[#allocation13 + $0x70] sm:$0xff]
        %v1299 = vld [vmem:[#allocation13 + $0x78] sm:$0xff]
        %v1300 = vld [vmem:[#allocation13 + $0x80] sm:$0xff]
        %v1301 = vld [vmem:[#allocation13 + $0x88] sm:$0xff]
        %v1302 = vld [vmem:[#allocation13 + $0x90] sm:$0xff]
        %v1303 = vld [vmem:[#allocation13 + $0x98] sm:$0xff]
        %v1304 = vld [vmem:[#allocation13 + $0xa0] sm:$0xff]
        %v1305 = vld [vmem:[#allocation13 + $0xa8] sm:$0xff]
        %v1306 = vld [vmem:[#allocation13 + $0xb0] sm:$0xff]
        %v1307 = vld [vmem:[#allocation13 + $0xb8] sm:$0xff]
        %v1308 = vld [vmem:[#allocation13 + $0xc0] sm:$0xff]
        %v1309 = vld [vmem:[#allocation13 + $0xc8] sm:$0xff]
        %v1310 = vld [vmem:[#allocation13 + $0xd0] sm:$0xff]
        %v1311 = vld [vmem:[#allocation13 + $0xd8] sm:$0xff]
        %v1312 = vld [vmem:[#allocation13 + $0xe0] sm:$0xff]
        %v1313 = vld [vmem:[#allocation13 + $0xe8] sm:$0xff]
        %v1314 = vld [vmem:[#allocation13 + $0xf0] sm:$0xff]
        %v1315 = vld [vmem:[#allocation13 + $0xf8] sm:$0xff]
        %v1316 = vld [vmem:[#allocation14] sm:$0xf]
        %v1318 = vperm.slane %v1316, 0
        %v1319 = vperm.slane %v1316, 1
        %v1320 = vperm.slane %v1316, 2
        %v1321 = vperm.slane %v1316, 3
        %v1358 = vunpack.c.l.b16 %v1284
        %v1359 = vunpack.c.h.b16 %v1284
        %v1360 = vunpack.c.l.b16 %v1285
        %v1361 = vunpack.c.h.b16 %v1285
        %v1362 = vunpack.c.l.b16 %v1286
        %v1363 = vunpack.c.h.b16 %v1286
        %v1364 = vunpack.c.l.b16 %v1287
        %v1365 = vunpack.c.h.b16 %v1287
        %v1366 = vunpack.c.l.b16 %v1288
        %v1367 = vunpack.c.h.b16 %v1288
        %v1368 = vunpack.c.l.b16 %v1289
        %v1369 = vunpack.c.h.b16 %v1289
        %v1370 = vunpack.c.l.b16 %v1290
        %v1371 = vunpack.c.h.b16 %v1290
        %v1372 = vunpack.c.l.b16 %v1291
        %v1373 = vunpack.c.h.b16 %v1291
        %v1374 = vunpack.c.l.b16 %v1292
        %v1375 = vunpack.c.h.b16 %v1292
        %v1376 = vunpack.c.l.b16 %v1293
        %v1377 = vunpack.c.h.b16 %v1293
        %v1378 = vunpack.c.l.b16 %v1294
        %v1379 = vunpack.c.h.b16 %v1294
        %v1380 = vunpack.c.l.b16 %v1295
        %v1381 = vunpack.c.h.b16 %v1295
        %v1382 = vunpack.c.l.b16 %v1296
        %v1383 = vunpack.c.h.b16 %v1296
        %v1384 = vunpack.c.l.b16 %v1297
        %v1385 = vunpack.c.h.b16 %v1297
        %v1386 = vunpack.c.l.b16 %v1298
        %v1387 = vunpack.c.h.b16 %v1298
        %v1388 = vunpack.c.l.b16 %v1299
        %v1389 = vunpack.c.h.b16 %v1299
        %v1390 = vunpack.c.l.b16 %v1300
        %v1391 = vunpack.c.h.b16 %v1300
        %v1392 = vunpack.c.l.b16 %v1301
        %v1393 = vunpack.c.h.b16 %v1301
        %v1394 = vunpack.c.l.b16 %v1302
        %v1395 = vunpack.c.h.b16 %v1302
        %v1396 = vunpack.c.l.b16 %v1303
        %v1397 = vunpack.c.h.b16 %v1303
        %v1398 = vunpack.c.l.b16 %v1304
        %v1399 = vunpack.c.h.b16 %v1304
        %v1400 = vunpack.c.l.b16 %v1305
        %v1401 = vunpack.c.h.b16 %v1305
        %v1402 = vunpack.c.l.b16 %v1306
        %v1403 = vunpack.c.h.b16 %v1306
        %v1404 = vunpack.c.l.b16 %v1307
        %v1405 = vunpack.c.h.b16 %v1307
        %v1406 = vunpack.c.l.b16 %v1308
        %v1407 = vunpack.c.h.b16 %v1308
        %v1408 = vunpack.c.l.b16 %v1309
        %v1409 = vunpack.c.h.b16 %v1309
        %v1410 = vunpack.c.l.b16 %v1310
        %v1411 = vunpack.c.h.b16 %v1310
        %v1412 = vunpack.c.l.b16 %v1311
        %v1413 = vunpack.c.h.b16 %v1311
        %v1414 = vunpack.c.l.b16 %v1312
        %v1415 = vunpack.c.h.b16 %v1312
        %v1416 = vunpack.c.l.b16 %v1313
        %v1417 = vunpack.c.h.b16 %v1313
        %v1418 = vunpack.c.l.b16 %v1314
        %v1419 = vunpack.c.h.b16 %v1314
        %v1420 = vunpack.c.l.b16 %v1315
        %v1421 = vunpack.c.h.b16 %v1315
        %v1422 = vpack.c.b16 %v1362, %v1358
        %v1423 = vpack.c.b16 %v1363, %v1359
        %v1424 = vpack.c.b16 %v1364, %v1360
        %v1425 = vpack.c.b16 %v1365, %v1361
        %v1426 = vpack.c.b16 %v1370, %v1366
        %v1427 = vpack.c.b16 %v1371, %v1367
        %v1428 = vpack.c.b16 %v1372, %v1368
        %v1429 = vpack.c.b16 %v1373, %v1369
        %v1430 = vpack.c.b16 %v1378, %v1374
        %v1431 = vpack.c.b16 %v1379, %v1375
        %v1432 = vpack.c.b16 %v1380, %v1376
        %v1433 = vpack.c.b16 %v1381, %v1377
        %v1434 = vpack.c.b16 %v1386, %v1382
        %v1435 = vpack.c.b16 %v1387, %v1383
        %v1436 = vpack.c.b16 %v1388, %v1384
        %v1437 = vpack.c.b16 %v1389, %v1385
        %v1438 = vpack.c.b16 %v1394, %v1390
        %v1439 = vpack.c.b16 %v1395, %v1391
        %v1440 = vpack.c.b16 %v1396, %v1392
        %v1441 = vpack.c.b16 %v1397, %v1393
        %v1442 = vpack.c.b16 %v1402, %v1398
        %v1443 = vpack.c.b16 %v1403, %v1399
        %v1444 = vpack.c.b16 %v1404, %v1400
        %v1445 = vpack.c.b16 %v1405, %v1401
        %v1446 = vpack.c.b16 %v1410, %v1406
        %v1447 = vpack.c.b16 %v1411, %v1407
        %v1448 = vpack.c.b16 %v1412, %v1408
        %v1449 = vpack.c.b16 %v1413, %v1409
        %v1450 = vpack.c.b16 %v1418, %v1414
        %v1451 = vpack.c.b16 %v1419, %v1415
        %v1452 = vpack.c.b16 %v1420, %v1416
        %v1453 = vpack.c.b16 %v1421, %v1417
        %1486 = vmatpush.bf16.msra.mxu0 %v1450
        %1487 = vmatpush.bf16.msra.mxu0 %v1446
        %1488 = vmatpush.bf16.msra.mxu0 %v1442
        %1489 = vmatpush.bf16.msra.mxu0 %v1438
        %1490 = vmatpush.bf16.msra.mxu0 %v1434
        %1491 = vmatpush.bf16.msra.mxu0 %v1430
        %1492 = vmatpush.bf16.msra.mxu0 %v1426
        %1493 = vmatpush.bf16.msra.mxu0 %v1422
        %1494 = vmatmul.bf16.gmra.mxu0 %v1283
        %v1495 = vpop.f32.mrf.mxu0
        %v1496 = vadd.f32 %v1318, %v1495
        %v1497 = vpop.f32.mrf.mxu0
        %1498 = vdwg.mxu0
        %1499 = vmatpush.bf16.msra.mxu0 %v1451
        %1500 = vmatpush.bf16.msra.mxu0 %v1447
        %1501 = vmatpush.bf16.msra.mxu0 %v1443
        %1502 = vmatpush.bf16.msra.mxu0 %v1439
        %1503 = vmatpush.bf16.msra.mxu0 %v1435
        %1504 = vmatpush.bf16.msra.mxu0 %v1431
        %1505 = vmatpush.bf16.msra.mxu0 %v1427
        %1506 = vmatpush.bf16.msra.mxu0 %v1423
        %1507 = vmatmul.bf16.gmra.mxu0 %v1283
        %v1508 = vpop.f32.mrf.mxu0
        %v1509 = vadd.f32 %v1319, %v1508
        %v1510 = vpop.f32.mrf.mxu0
        %1511 = vdwg.mxu0
        %1512 = vmatpush.bf16.msra.mxu0 %v1452
        %1513 = vmatpush.bf16.msra.mxu0 %v1448
        %1514 = vmatpush.bf16.msra.mxu0 %v1444
        %1515 = vmatpush.bf16.msra.mxu0 %v1440
        %1516 = vmatpush.bf16.msra.mxu0 %v1436
        %1517 = vmatpush.bf16.msra.mxu0 %v1432
        %1518 = vmatpush.bf16.msra.mxu0 %v1428
        %1519 = vmatpush.bf16.msra.mxu0 %v1424
        %1520 = vmatmul.bf16.gmra.mxu0 %v1283
        %v1521 = vpop.f32.mrf.mxu0
        %v1522 = vadd.f32 %v1320, %v1521
        %v1523 = vpop.f32.mrf.mxu0
        %1524 = vdwg.mxu0
        %1525 = vmatpush.bf16.msra.mxu0 %v1453
        %1526 = vmatpush.bf16.msra.mxu0 %v1449
        %1527 = vmatpush.bf16.msra.mxu0 %v1445
        %1528 = vmatpush.bf16.msra.mxu0 %v1441
        %1529 = vmatpush.bf16.msra.mxu0 %v1437
        %1530 = vmatpush.bf16.msra.mxu0 %v1433
        %1531 = vmatpush.bf16.msra.mxu0 %v1429
        %1532 = vmatpush.bf16.msra.mxu0 %v1425
        %1533 = vmatmul.bf16.gmra.mxu0 %v1283
        %v1534 = vpop.f32.mrf.mxu0
        %v1535 = vadd.f32 %v1321, %v1534
        %v1536 = vpop.f32.mrf.mxu0
        %1537 = vdwg.mxu0
        %v1538 = vmax.f32 %v1496, 0.0
        %v1539 = vmax.f32 %v1509, 0.0
        %v1540 = vmax.f32 %v1522, 0.0
        %v1541 = vmax.f32 %v1535, 0.0
        %v1542 = vpack.c.bf16 %v1538, %v1538
        %v1543 = vpack.c.bf16 %v1539, %v1539
        %v1544 = vpack.c.bf16 %v1540, %v1540
        %v1545 = vpack.c.bf16 %v1541, %v1541
        %v1546 = vld [vmem:[#allocation16] sm:$0xf]
        %v1547 = vld [vmem:[#allocation16 + $0x4] sm:$0xf]
        %v1548 = vld [vmem:[#allocation16 + $0x8] sm:$0xf]
        %v1549 = vld [vmem:[#allocation16 + $0xc] sm:$0xf]
        %v1550 = vld [vmem:[#allocation16 + $0x10] sm:$0xf]
        %v1551 = vld [vmem:[#allocation16 + $0x14] sm:$0xf]
        %v1552 = vld [vmem:[#allocation16 + $0x18] sm:$0xf]
        %v1553 = vld [vmem:[#allocation16 + $0x1c] sm:$0xf]
        %v1554 = vld [vmem:[#allocation16 + $0x20] sm:$0xf]
        %v1555 = vld [vmem:[#allocation16 + $0x24] sm:$0xf]
        %v1556 = vld [vmem:[#allocation16 + $0x28] sm:$0xf]
        %v1557 = vld [vmem:[#allocation16 + $0x2c] sm:$0xf]
        %v1558 = vld [vmem:[#allocation16 + $0x30] sm:$0xf]
        %v1559 = vld [vmem:[#allocation16 + $0x34] sm:$0xf]
        %v1560 = vld [vmem:[#allocation16 + $0x38] sm:$0xf]
        %v1561 = vld [vmem:[#allocation16 + $0x3c] sm:$0xf]
        %v1562 = vld [vmem:[#allocation16 + $0x40] sm:$0xf]
        %v1563 = vld [vmem:[#allocation16 + $0x44] sm:$0xf]
        %v1564 = vld [vmem:[#allocation16 + $0x48] sm:$0xf]
        %v1565 = vld [vmem:[#allocation16 + $0x4c] sm:$0xf]
        %v1566 = vld [vmem:[#allocation16 + $0x50] sm:$0xf]
        %v1567 = vld [vmem:[#allocation16 + $0x54] sm:$0xf]
        %v1568 = vld [vmem:[#allocation16 + $0x58] sm:$0xf]
        %v1569 = vld [vmem:[#allocation16 + $0x5c] sm:$0xf]
        %v1570 = vld [vmem:[#allocation16 + $0x60] sm:$0xf]
        %v1571 = vld [vmem:[#allocation16 + $0x64] sm:$0xf]
        %v1572 = vld [vmem:[#allocation16 + $0x68] sm:$0xf]
        %v1573 = vld [vmem:[#allocation16 + $0x6c] sm:$0xf]
        %v1574 = vld [vmem:[#allocation16 + $0x70] sm:$0xf]
        %v1575 = vld [vmem:[#allocation16 + $0x74] sm:$0xf]
        %v1576 = vld [vmem:[#allocation16 + $0x78] sm:$0xf]
        %v1577 = vld [vmem:[#allocation16 + $0x7c] sm:$0xf]
        %v1578 = vld [vmem:[#allocation16 + $0x80] sm:$0xf]
        %v1579 = vld [vmem:[#allocation16 + $0x84] sm:$0xf]
        %v1580 = vld [vmem:[#allocation16 + $0x88] sm:$0xf]
        %v1581 = vld [vmem:[#allocation16 + $0x8c] sm:$0xf]
        %v1582 = vld [vmem:[#allocation16 + $0x90] sm:$0xf]
        %v1583 = vld [vmem:[#allocation16 + $0x94] sm:$0xf]
        %v1584 = vld [vmem:[#allocation16 + $0x98] sm:$0xf]
        %v1585 = vld [vmem:[#allocation16 + $0x9c] sm:$0xf]
        %v1586 = vld [vmem:[#allocation16 + $0xa0] sm:$0xf]
        %v1587 = vld [vmem:[#allocation16 + $0xa4] sm:$0xf]
        %v1588 = vld [vmem:[#allocation16 + $0xa8] sm:$0xf]
        %v1589 = vld [vmem:[#allocation16 + $0xac] sm:$0xf]
        %v1590 = vld [vmem:[#allocation16 + $0xb0] sm:$0xf]
        %v1591 = vld [vmem:[#allocation16 + $0xb4] sm:$0xf]
        %v1592 = vld [vmem:[#allocation16 + $0xb8] sm:$0xf]
        %v1593 = vld [vmem:[#allocation16 + $0xbc] sm:$0xf]
        %v1594 = vld [vmem:[#allocation16 + $0xc0] sm:$0xf]
        %v1595 = vld [vmem:[#allocation16 + $0xc4] sm:$0xf]
        %v1596 = vld [vmem:[#allocation16 + $0xc8] sm:$0xf]
        %v1597 = vld [vmem:[#allocation16 + $0xcc] sm:$0xf]
        %v1598 = vld [vmem:[#allocation16 + $0xd0] sm:$0xf]
        %v1599 = vld [vmem:[#allocation16 + $0xd4] sm:$0xf]
        %v1600 = vld [vmem:[#allocation16 + $0xd8] sm:$0xf]
        %v1601 = vld [vmem:[#allocation16 + $0xdc] sm:$0xf]
        %v1602 = vld [vmem:[#allocation16 + $0xe0] sm:$0xf]
        %v1603 = vld [vmem:[#allocation16 + $0xe4] sm:$0xf]
        %v1604 = vld [vmem:[#allocation16 + $0xe8] sm:$0xf]
        %v1605 = vld [vmem:[#allocation16 + $0xec] sm:$0xf]
        %v1606 = vld [vmem:[#allocation16 + $0xf0] sm:$0xf]
        %v1607 = vld [vmem:[#allocation16 + $0xf4] sm:$0xf]
        %v1608 = vld [vmem:[#allocation16 + $0xf8] sm:$0xf]
        %v1609 = vld [vmem:[#allocation16 + $0xfc] sm:$0xf]
        %v1610 = vld [vmem:[#allocation17] sm:$0x1]
        %v1612 = vperm.slane %v1610, 0
        %v1678 = vunpack.c.l.b16 %v1546
        %v1679 = vunpack.c.l.b16 %v1547
        %v1680 = vunpack.c.l.b16 %v1548
        %v1681 = vunpack.c.l.b16 %v1549
        %v1682 = vunpack.c.l.b16 %v1550
        %v1683 = vunpack.c.l.b16 %v1551
        %v1684 = vunpack.c.l.b16 %v1552
        %v1685 = vunpack.c.l.b16 %v1553
        %v1686 = vunpack.c.l.b16 %v1554
        %v1687 = vunpack.c.l.b16 %v1555
        %v1688 = vunpack.c.l.b16 %v1556
        %v1689 = vunpack.c.l.b16 %v1557
        %v1690 = vunpack.c.l.b16 %v1558
        %v1691 = vunpack.c.l.b16 %v1559
        %v1692 = vunpack.c.l.b16 %v1560
        %v1693 = vunpack.c.l.b16 %v1561
        %v1694 = vunpack.c.l.b16 %v1562
        %v1695 = vunpack.c.l.b16 %v1563
        %v1696 = vunpack.c.l.b16 %v1564
        %v1697 = vunpack.c.l.b16 %v1565
        %v1698 = vunpack.c.l.b16 %v1566
        %v1699 = vunpack.c.l.b16 %v1567
        %v1700 = vunpack.c.l.b16 %v1568
        %v1701 = vunpack.c.l.b16 %v1569
        %v1702 = vunpack.c.l.b16 %v1570
        %v1703 = vunpack.c.l.b16 %v1571
        %v1704 = vunpack.c.l.b16 %v1572
        %v1705 = vunpack.c.l.b16 %v1573
        %v1706 = vunpack.c.l.b16 %v1574
        %v1707 = vunpack.c.l.b16 %v1575
        %v1708 = vunpack.c.l.b16 %v1576
        %v1709 = vunpack.c.l.b16 %v1577
        %v1710 = vunpack.c.l.b16 %v1578
        %v1711 = vunpack.c.l.b16 %v1579
        %v1712 = vunpack.c.l.b16 %v1580
        %v1713 = vunpack.c.l.b16 %v1581
        %v1714 = vunpack.c.l.b16 %v1582
        %v1715 = vunpack.c.l.b16 %v1583
        %v1716 = vunpack.c.l.b16 %v1584
        %v1717 = vunpack.c.l.b16 %v1585
        %v1718 = vunpack.c.l.b16 %v1586
        %v1719 = vunpack.c.l.b16 %v1587
        %v1720 = vunpack.c.l.b16 %v1588
        %v1721 = vunpack.c.l.b16 %v1589
        %v1722 = vunpack.c.l.b16 %v1590
        %v1723 = vunpack.c.l.b16 %v1591
        %v1724 = vunpack.c.l.b16 %v1592
        %v1725 = vunpack.c.l.b16 %v1593
        %v1726 = vunpack.c.l.b16 %v1594
        %v1727 = vunpack.c.l.b16 %v1595
        %v1728 = vunpack.c.l.b16 %v1596
        %v1729 = vunpack.c.l.b16 %v1597
        %v1730 = vunpack.c.l.b16 %v1598
        %v1731 = vunpack.c.l.b16 %v1599
        %v1732 = vunpack.c.l.b16 %v1600
        %v1733 = vunpack.c.l.b16 %v1601
        %v1734 = vunpack.c.l.b16 %v1602
        %v1735 = vunpack.c.l.b16 %v1603
        %v1736 = vunpack.c.l.b16 %v1604
        %v1737 = vunpack.c.l.b16 %v1605
        %v1738 = vunpack.c.l.b16 %v1606
        %v1739 = vunpack.c.l.b16 %v1607
        %v1740 = vunpack.c.l.b16 %v1608
        %v1741 = vunpack.c.l.b16 %v1609
        %v1742 = vpack.c.b16 %v1679, %v1678
        %v1743 = vpack.c.b16 %v1681, %v1680
        %v1744 = vpack.c.b16 %v1683, %v1682
        %v1745 = vpack.c.b16 %v1685, %v1684
        %v1746 = vpack.c.b16 %v1687, %v1686
        %v1747 = vpack.c.b16 %v1689, %v1688
        %v1748 = vpack.c.b16 %v1691, %v1690
        %v1749 = vpack.c.b16 %v1693, %v1692
        %v1750 = vpack.c.b16 %v1695, %v1694
        %v1751 = vpack.c.b16 %v1697, %v1696
        %v1752 = vpack.c.b16 %v1699, %v1698
        %v1753 = vpack.c.b16 %v1701, %v1700
        %v1754 = vpack.c.b16 %v1703, %v1702
        %v1755 = vpack.c.b16 %v1705, %v1704
        %v1756 = vpack.c.b16 %v1707, %v1706
        %v1757 = vpack.c.b16 %v1709, %v1708
        %v1758 = vpack.c.b16 %v1711, %v1710
        %v1759 = vpack.c.b16 %v1713, %v1712
        %v1760 = vpack.c.b16 %v1715, %v1714
        %v1761 = vpack.c.b16 %v1717, %v1716
        %v1762 = vpack.c.b16 %v1719, %v1718
        %v1763 = vpack.c.b16 %v1721, %v1720
        %v1764 = vpack.c.b16 %v1723, %v1722
        %v1765 = vpack.c.b16 %v1725, %v1724
        %v1766 = vpack.c.b16 %v1727, %v1726
        %v1767 = vpack.c.b16 %v1729, %v1728
        %v1768 = vpack.c.b16 %v1731, %v1730
        %v1769 = vpack.c.b16 %v1733, %v1732
        %v1770 = vpack.c.b16 %v1735, %v1734
        %v1771 = vpack.c.b16 %v1737, %v1736
        %v1772 = vpack.c.b16 %v1739, %v1738
        %v1773 = vpack.c.b16 %v1741, %v1740
        %1806 = vmatpush.bf16.msra.mxu0 %v1749
        %1807 = vmatpush.bf16.msra.mxu0 %v1748
        %1808 = vmatpush.bf16.msra.mxu0 %v1747
        %1809 = vmatpush.bf16.msra.mxu0 %v1746
        %1810 = vmatpush.bf16.msra.mxu0 %v1745
        %1811 = vmatpush.bf16.msra.mxu0 %v1744
        %1812 = vmatpush.bf16.msra.mxu0 %v1743
        %1813 = vmatpush.bf16.msra.mxu0 %v1742
        %1814 = vmatmul.bf16.gmra.mxu0 %v1542
        %v1815 = vpop.f32.mrf.mxu0
        %v1816 = vadd.f32 %v1612, %v1815
        %v1817 = vpop.f32.mrf.mxu0
        %1818 = vdwg.mxu0
        %1819 = vmatpush.bf16.msra.mxu0 %v1757
        %1820 = vmatpush.bf16.msra.mxu0 %v1756
        %1821 = vmatpush.bf16.msra.mxu0 %v1755
        %1822 = vmatpush.bf16.msra.mxu0 %v1754
        %1823 = vmatpush.bf16.msra.mxu0 %v1753
        %1824 = vmatpush.bf16.msra.mxu0 %v1752
        %1825 = vmatpush.bf16.msra.mxu0 %v1751
        %1826 = vmatpush.bf16.msra.mxu0 %v1750
        %1827 = vmatmul.bf16.gmra.mxu0 %v1543
        %v1828 = vpop.f32.mrf.mxu0
        %v1829 = vadd.f32 %v1816, %v1828
        %v1830 = vpop.f32.mrf.mxu0
        %1831 = vdwg.mxu0
        %1832 = vmatpush.bf16.msra.mxu0 %v1765
        %1833 = vmatpush.bf16.msra.mxu0 %v1764
        %1834 = vmatpush.bf16.msra.mxu0 %v1763
        %1835 = vmatpush.bf16.msra.mxu0 %v1762
        %1836 = vmatpush.bf16.msra.mxu0 %v1761
        %1837 = vmatpush.bf16.msra.mxu0 %v1760
        %1838 = vmatpush.bf16.msra.mxu0 %v1759
        %1839 = vmatpush.bf16.msra.mxu0 %v1758
        %1840 = vmatmul.bf16.gmra.mxu0 %v1544
        %v1841 = vpop.f32.mrf.mxu0
        %v1842 = vadd.f32 %v1829, %v1841
        %v1843 = vpop.f32.mrf.mxu0
        %1844 = vdwg.mxu0
        %1845 = vmatpush.bf16.msra.mxu0 %v1773
        %1846 = vmatpush.bf16.msra.mxu0 %v1772
        %1847 = vmatpush.bf16.msra.mxu0 %v1771
        %1848 = vmatpush.bf16.msra.mxu0 %v1770
        %1849 = vmatpush.bf16.msra.mxu0 %v1769
        %1850 = vmatpush.bf16.msra.mxu0 %v1768
        %1851 = vmatpush.bf16.msra.mxu0 %v1767
        %1852 = vmatpush.bf16.msra.mxu0 %v1766
        %1853 = vmatmul.bf16.gmra.mxu0 %v1545
        %v1854 = vpop.f32.mrf.mxu0
        %v1855 = vadd.f32 %v1842, %v1854
        %v1856 = vpop.f32.mrf.mxu0
        %1857 = vdwg.mxu0
        %v1858 = vadd.f32 %v1855, %v1250
        %1859 = vst [vmem:[%s654] sm:$0xff] %v1858
        %s1860 = sand.u32 %s350, 1
        %s1861 = scalar_lea.sflag [#allocation4], %s1860
        %s1862 = sand.u32 %s350, 1
        %s1863 = smul.addr %s1862, 8
        %s1864 = scalar_lea.vmem [#allocation19], %s1863
        // Predicated region
        $region117: #{decoder_forward.1} parent=75 // pred_check
          %p1865 = pneg %p360
        $region118: #{decoder_forward.1} parent=75 // pred_check_branch
          %1867 = sbr.rel (%p1865) target = $region120
        $region119: #{decoder_forward.1} parent=75 // pred_region
          %1869 = vsyncadd %s1861, 0
          %s1870 = smul.addr %s38, 8
          %s1871 = scalar_lea.hbm %s14, %s1870
          %s1873 = sshll.u32 %s1864, 4
          %s1874 = int_to_ptr.vmem [resolvable:$true] %s1873
          %s1875 = sshll.u32 %s1871, 4
          %s1876 = int_to_ptr.hbm [resolvable:$true] %s1875
          %1878 = dma.vmem_to_hbm [thread:$0]  %s1874, 128, %s1876, %s1861
        $region120: #{decoder_forward.1} parent=75 // pred_fallthru
          _
      $region76: #{decoder_forward.1} parent=5 // pred_fallthru
        _
      %p1879 = scmp.le.s32.totalorder 2, %s33
      // Predicated region
      $region121: #{decoder_forward.1} parent=5 // pred_check
        %p1880 = pneg %p1879
      $region122: #{decoder_forward.1} parent=5 // pred_check_branch
        %1882 = sbr.rel (%p1880) target = $region124
      $region123: #{decoder_forward.1} parent=5 // pred_region
        %s1883 = ssub.s32 %s33, 2
        // Predicated region
        $region125: #{decoder_forward.1} parent=123 // pred_check
          %p1884 = pneg %p366
        $region126: #{decoder_forward.1} parent=123 // pred_check_branch
          %1886 = sbr.rel (%p1884) target = $region128
        $region127: #{decoder_forward.1} parent=123 // pred_region
          %s1887 = sand.u32 %s351, 1
          %s1888 = scalar_lea.sflag [#allocation4], %s1887
          %s1889 = sand.u32 %s351, 1
          %s1890 = smul.addr %s1889, 8
          %s1891 = scalar_lea.vmem [#allocation19], %s1890
          %1893 = dma.done %s1888, 128
        $region128: #{decoder_forward.1} parent=123 // pred_fallthru
          _
      $region124: #{decoder_forward.1} parent=5 // pred_fallthru
        _
    $region6: #{decoder_forward.1} parent=1 // loop_footer
      %s37 = sadd.s32 1, %s33
    $region7: #{decoder_forward.1} parent=1 // loop_footer_branch
      %32 = sbr.rel target = $region3
    $region8: #{decoder_forward.1} parent=1 // loop_exit
      _
    %1894 = vsyncpa [#allocation3], 1
    %s1895 = scalar_lea.sflag [#allocation3], 1
    %1896 = vsyncpa %s1895, 1
    %1897 = vsyncpa [#allocation6], 1
    %s1898 = scalar_lea.sflag [#allocation6], 1
    %1899 = vsyncpa %s1898, 1
    %1900 = vsyncpa [#allocation9], 1
    %1901 = vsyncpa [#allocation12], 1
    %1902 = vsyncpa [#allocation15], 1
    %1903 = vsyncpa [#allocation18], 1
    %1904 = vsyncpa [#allocation4], 1
    %s1905 = scalar_lea.sflag [#allocation4], 1
    %1906 = vsyncpa %s1905, 1

</llo_original>
